<compile_context>
chip_gen: v5e
topology: v5e:2x2
jax: 0.10.0
libtpu: 0.0.40
codegen_flags: <defaults>
</compile_context>

<pallas_src>
import functools

import jax
import jax.numpy as jnp
import numpy as np
from jax import lax
from jax.experimental import pallas as pl
from jax.experimental.pallas import tpu as pltpu


# -----------------------------------------------------------------------------
# In-kernel helpers
# -----------------------------------------------------------------------------
def _conv3x3_flat(apad_ref, wT, mask_l, mask_r, W, HW):
    """3x3 / stride-1 / pad-1 conv in the (C, H*W) flat layout.

    apad_ref holds the conv input at lane offset W+1 of a zero-halo buffer of length
    H*W + 2W + 2.  Tap (kh, kw) is the lane-shifted slice starting at
    (W+1) + (kh-1)*W + (kw-1); mask_l / mask_r zero columns that wrapped across image
    rows.  Returns (Cout, H*W) = wT (Cout, 9*C) @ im2col patches (single MXU matmul).
    """
    base = W + 1
    taps = []
    for kh in range(3):
        for kw in range(3):
            start = base + (kh - 1) * W + (kw - 1)
            patch = apad_ref[:, start:start + HW]
            if kw == 0:
                patch = patch * mask_l
            elif kw == 2:
                patch = patch * mask_r
            taps.append(patch)
    patches = jnp.concatenate(taps, axis=0)                        # (9*C, H*W)
    return jnp.dot(wT, patches, preferred_element_type=jnp.float32)


# -----------------------------------------------------------------------------
# Fused block kernel (one image per grid step, all layers in one body)
# -----------------------------------------------------------------------------
def _block_kernel(*refs, W, n_noup):
    """Fused DecoderResidualBlock for one image, CHW-flat layout.

    refs (n_noup > 0):
      x_ref    : (1, C, H*W)           lane-dense input block
      w1n_ref  : (n_noup, C, 9*C)      conv1 im2col weights (BN2 scale folded into rows)
      w2n_ref  : (n_noup, C, 9*C)      conv2 im2col weights
      bnn_ref  : (n_noup, 3, C, 1)     per-layer [s1, b1, b2]
      w1u_ref  : (C, 9*C)              up-layer conv1 weights (BN2 scale folded)
      wpar_ref : (4*Co, 4*C)           ConvT(k=3,s=2,p=1,op=1) parity-plane weights
      w3_ref   : (Co, C)               ConvT(k=1,s=2,op=1) shortcut weights
      bnu_ref  : (5, C, 1)             [s1, b1, b2, s3, b3]
      o_ref    : (1, 4, Co, H*W)       output parity planes (ee, eo, oe, oo)
      apad_ref : (C, H*W + 2*W + 2)    zero-halo VMEM scratch (shared by every conv)
    """
    if n_noup > 0:
        (x_ref, w1n_ref, w2n_ref, bnn_ref,
         w1u_ref, wpar_ref, w3_ref, bnu_ref, o_ref, apad_ref) = refs
    else:
        (x_ref, w1u_ref, wpar_ref, w3_ref, bnu_ref, o_ref, apad_ref) = refs

    C = apad_ref.shape[0]
    HW = x_ref.shape[2]
    Co = w3_ref.shape[0]
    base = W + 1

    # Column-halo masks generated in-kernel (no extra input streams).
    lane = lax.broadcasted_iota(jnp.int32, (1, HW), 1)
    col = (lane & (W - 1)) if (W & (W - 1)) == 0 else (lane % W)
    mask_l = (col != 0).astype(jnp.float32)       # kills wrapped w-1 taps
    mask_r = (col != W - 1).astype(jnp.float32)   # kills wrapped w+1 taps

    # Zero ONLY the halo lanes; the interior is fully overwritten before every conv.
    # Done every grid step (not pl.when(pid==0)) so it stays correct under megacore sharding.
    apad_ref[:, :base] = jnp.zeros((C, base), jnp.float32)
    apad_ref[:, base + HW:] = jnp.zeros((C, base), jnp.float32)

    x = x_ref[0]                                                   # (C, H*W), residual carry

    # ---- (layers-1) x DecoderResidualLayer(upsample=False), unrolled, activation resident ----
    for l in range(n_noup):
        s1 = bnn_ref[l, 0]
        b1 = bnn_ref[l, 1]
        b2 = bnn_ref[l, 2]
        a = jnp.maximum(x * s1 + b1, 0.0)                          # BN1 + ReLU
        apad_ref[:, base:base + HW] = a
        y1 = _conv3x3_flat(apad_ref, w1n_ref[l], mask_l, mask_r, W, HW)   # conv1 (s2 folded)
        b = jnp.maximum(y1 + b2, 0.0)                              # BN2 (scale folded) + ReLU
        apad_ref[:, base:base + HW] = b
        y2 = _conv3x3_flat(apad_ref, w2n_ref[l], mask_l, mask_r, W, HW)   # conv2
        x = y2 + x                                                 # residual add, no final ReLU

    # ---- final DecoderResidualLayer(upsample=True) ----
    s1 = bnu_ref[0]
    b1 = bnu_ref[1]
    b2 = bnu_ref[2]
    s3 = bnu_ref[3]
    b3 = bnu_ref[4]

    a = jnp.maximum(x * s1 + b1, 0.0)                              # BN1 + ReLU
    apad_ref[:, base:base + HW] = a
    y1 = _conv3x3_flat(apad_ref, w1u_ref[...], mask_l, mask_r, W, HW)     # conv1 (s2 folded)

    # BN2 (scale folded) + ReLU -> ConvTranspose 3x3 stride 2 via its 4 output-parity planes.
    b = jnp.maximum(y1 + b2, 0.0)
    apad_ref[:, base:base + HW] = b                                # halo is still zero
    shifts = jnp.concatenate(
        [apad_ref[:, base:base + HW],                              # b[m,   n  ]
         apad_ref[:, base + 1:base + 1 + HW] * mask_r,             # b[m,   n+1]
         apad_ref[:, base + W:base + W + HW],                      # b[m+1, n  ]
         apad_ref[:, base + W + 1:base + W + 1 + HW] * mask_r],    # b[m+1, n+1]
        axis=0)                                                    # (4*C, H*W)
    planes = jnp.dot(wpar_ref[...], shifts,
                     preferred_element_type=jnp.float32)           # (4*Co, H*W)

    # Shortcut: BN3 + ReLU -> ConvTranspose 1x1 stride 2 (hits only the even/even plane).
    c = jnp.maximum(x * s3 + b3, 0.0)
    idt = jnp.dot(w3_ref[...], c, preferred_element_type=jnp.float32)     # (Co, H*W)

    o_ref[0, 0] = (planes[0 * Co:1 * Co, :] + idt).astype(o_ref.dtype)    # out[2m,   2n  ]
    o_ref[0, 1] = planes[1 * Co:2 * Co, :].astype(o_ref.dtype)            # out[2m,   2n+1]
    o_ref[0, 2] = planes[2 * Co:3 * Co, :].astype(o_ref.dtype)            # out[2m+1, 2n  ]
    o_ref[0, 3] = planes[3 * Co:4 * Co, :].astype(o_ref.dtype)            # out[2m+1, 2n+1]


# -----------------------------------------------------------------------------
# Wrapper-side parameter preparation
# -----------------------------------------------------------------------------
def _fold_bn(gamma, beta, mean, var, eps=1e-5):
    s = (gamma / jnp.sqrt(var + eps)).astype(jnp.float32)
    return s, (beta - mean * s).astype(jnp.float32)


def _conv_weights_T(w_oihw):
    """OIHW (Cout, Cin, 3, 3) -> (Cout, 9*Cin), column = (kh*3+kw)*Cin + cin."""
    co, ci = w_oihw.shape[0], w_oihw.shape[1]
    return jnp.transpose(w_oihw, (0, 2, 3, 1)).reshape(co, 9 * ci).astype(jnp.float32)


def _parity_weights(w_t):
    """ConvTranspose2d(k=3, s=2, p=1, op=1) weight (Cin, Cout, 3, 3) -> (4*Cout, 4*Cin).

    Maps stacked columns [b(m,n); b(m,n+1); b(m+1,n); b(m+1,n+1)] to the four output
    parity planes out[2m+ph, 2n+pw] in order (ee, eo, oe, oo)."""
    ci, co = w_t.shape[0], w_t.shape[1]
    z = jnp.zeros((co, ci), jnp.float32)
    t = lambda kh, kw: jnp.transpose(w_t[:, :, kh, kw]).astype(jnp.float32)   # (Co, Ci)
    rows = [
        jnp.concatenate([t(1, 1), z, z, z], axis=1),                     # even row, even col
        jnp.concatenate([t(1, 2), t(1, 0), z, z], axis=1),               # even row, odd  col
        jnp.concatenate([t(2, 1), z, t(0, 1), z], axis=1),               # odd  row, even col
        jnp.concatenate([t(2, 2), t(2, 0), t(0, 2), t(0, 0)], axis=1),   # odd  row, odd  col
    ]
    return jnp.concatenate(rows, axis=0)                                 # (4*Co, 4*Ci)


def _vmem_budget_bytes(C, Co, HW, W, n_noup):
    """Scoped-VMEM request derived from the actual per-grid-step block sizes."""
    f32 = 4
    io_blocks = (2 * C * HW + 2 * 4 * Co * HW) * f32             # double-buffered in/out blocks
    weights = 2 * (2 * n_noup * 9 * C * C + 9 * C * C + 16 * Co * C + Co * C
                   + 3 * n_noup * C + 5 * C) * f32
    apad = C * (HW + 2 * W + 2) * f32
    live = (9 * C + 4 * C + 4 * Co + 4 * C + Co) * HW * f32      # patches/shifts/planes/act
    total = io_blocks + weights + apad + live
    return int(min(max(2 * total, 16 << 20), 48 << 20))          # 48 MiB cap fits v7x VMEM


# -----------------------------------------------------------------------------
# pallas_call wrapper: whole block in ONE kernel
# -----------------------------------------------------------------------------
def decoder_residual_block(x_nchw, noup_params, up_params):
    """DecoderResidualBlock forward (inference-mode BatchNorm).

    x_nchw      : (N, hidden, H, W) float32
    noup_params : list of (bn1, w1, bn2, w2) for the upsample=False layers
                  w* OIHW (hidden, hidden, 3, 3); bn* = (gamma, beta, mean, var)
    up_params   : (bn1, w1, bn2, w2t, bn3, w3t) for the final upsample=True layer
                  w1 OIHW (hidden, hidden, 3, 3)
                  w2t ConvTranspose weight (hidden, out, 3, 3)
                  w3t ConvTranspose weight (hidden, out, 1, 1)
    Returns (N, out, 2H, 2W) float32.
    """
    N, C, H, W = x_nchw.shape
    HW = H * W
    n_noup = len(noup_params)
    xf = x_nchw.astype(jnp.float32).reshape(N, C, HW)   # CHW-flat: contiguous reshape only

    # ---- fold BN + pack weights (BN2 scale folded into conv1 output rows) ----
    args = [xf]
    in_specs = [pl.BlockSpec((1, C, HW), lambda n: (n, 0, 0))]
    if n_noup:
        w1n, w2n, bnn = [], [], []
        for bn1, w1, bn2, w2 in noup_params:
            s1, b1 = _fold_bn(*bn1)
            s2, b2 = _fold_bn(*bn2)
            w1n.append(s2[:, None] * _conv_weights_T(w1))
            w2n.append(_conv_weights_T(w2))
            bnn.append(jnp.stack([s1, b1, b2], axis=0).reshape(3, C, 1))
        args += [jnp.stack(w1n), jnp.stack(w2n), jnp.stack(bnn)]
        in_specs += [
            pl.BlockSpec((n_noup, C, 9 * C), lambda n: (0, 0, 0)),
            pl.BlockSpec((n_noup, C, 9 * C), lambda n: (0, 0, 0)),
            pl.BlockSpec((n_noup, 3, C, 1), lambda n: (0, 0, 0, 0)),
        ]

    bn1, w1, bn2, w2t, bn3, w3t = up_params
    Co = w2t.shape[1]
    s1, b1 = _fold_bn(*bn1)
    s2, b2 = _fold_bn(*bn2)
    s3, b3 = _fold_bn(*bn3)
    args += [
        s2[:, None] * _conv_weights_T(w1),                  # (C, 9C)  conv1, s2 folded
        _parity_weights(w2t),                               # (4Co, 4C)
        jnp.transpose(w3t[:, :, 0, 0]).astype(jnp.float32), # (Co, C)
        jnp.stack([s1, b1, b2, s3, b3], axis=0).reshape(5, C, 1),
    ]
    in_specs += [
        pl.BlockSpec((C, 9 * C), lambda n: (0, 0)),
        pl.BlockSpec((4 * Co, 4 * C), lambda n: (0, 0)),
        pl.BlockSpec((Co, C), lambda n: (0, 0)),
        pl.BlockSpec((5, C, 1), lambda n: (0, 0, 0)),
    ]
    # TODO(synk): mark the constant weight/BN blocks pipeline_mode=pl.Buffered(1) once
    # channel counts are large enough for their double-buffering to matter under v7x VMEM.

    planes = pl.pallas_call(
        functools.partial(_block_kernel, W=W, n_noup=n_noup),
        out_shape=jax.ShapeDtypeStruct((N, 4, Co, HW), jnp.float32),
        grid=(N,),
        in_specs=in_specs,
        out_specs=pl.BlockSpec((1, 4, Co, HW), lambda n: (n, 0, 0, 0)),
        scratch_shapes=[pltpu.VMEM((C, HW + 2 * W + 2), jnp.float32)],
        compiler_params=pltpu.CompilerParams(
            dimension_semantics=("parallel",),
            vmem_limit_bytes=_vmem_budget_bytes(C, Co, HW, W, n_noup)),
    )(*args)

    # Interleave the parity planes (ee, eo, oe, oo) -> NCHW with one XLA transpose.
    # TODO(synk): interleave the column parity in-kernel (strided store) so only a
    # row-granular relayout remains and the largest tensor skips this extra HBM pass.
    p6 = planes.reshape(N, 2, 2, Co, H, W)
    return jnp.transpose(p6, (0, 3, 4, 1, 5, 2)).reshape(N, Co, 2 * H, 2 * W)


# -----------------------------------------------------------------------------
# Pure-JAX reference (XLA convs) for correctness checking
# -----------------------------------------------------------------------------
def _reference_block(x_nchw, noup_params, up_params):
    x = jnp.transpose(x_nchw, (0, 2, 3, 1)).astype(jnp.float32)   # NHWC
    prec = lax.Precision.HIGHEST

    def bn_relu(a, bn):
        s, b = _fold_bn(*bn)
        return jnp.maximum(a * s.reshape(1, 1, 1, -1) + b.reshape(1, 1, 1, -1), 0.0)

    def conv3x3(a, w_oihw):
        w_hwio = jnp.transpose(w_oihw, (2, 3, 1, 0)).astype(jnp.float32)
        return lax.conv_general_dilated(a, w_hwio, (1, 1), ((1, 1), (1, 1)),
                                        dimension_numbers=("NHWC", "HWIO", "NHWC"),
                                        precision=prec)

    def convT3x3_s2(a, w_t):     # k=3, stride=2, padding=1, output_padding=1
        w_hwio = jnp.transpose(w_t[:, :, ::-1, ::-1], (2, 3, 0, 1)).astype(jnp.float32)
        return lax.conv_general_dilated(a, w_hwio, (1, 1), ((1, 2), (1, 2)),
                                        lhs_dilation=(2, 2),
                                        dimension_numbers=("NHWC", "HWIO", "NHWC"),
                                        precision=prec)

    def convT1x1_s2(a, w_t):     # k=1, stride=2, padding=0, output_padding=1
        w_hwio = jnp.transpose(w_t, (2, 3, 0, 1)).astype(jnp.float32)
        return lax.conv_general_dilated(a, w_hwio, (1, 1), ((0, 1), (0, 1)),
                                        lhs_dilation=(2, 2),
                                        dimension_numbers=("NHWC", "HWIO", "NHWC"),
                                        precision=prec)

    for bn1, w1, bn2, w2 in noup_params:
        y = conv3x3(bn_relu(x, bn1), w1)
        y = conv3x3(bn_relu(y, bn2), w2)
        x = y + x
    bn1, w1, bn2, w2t, bn3, w3t = up_params
    y = conv3x3(bn_relu(x, bn1), w1)
    y = convT3x3_s2(bn_relu(y, bn2), w2t)
    idt = convT1x1_s2(bn_relu(x, bn3), w3t)
    out = y + idt
    return jnp.transpose(out, (0, 3, 1, 2))


# -----------------------------------------------------------------------------
if __name__ == "__main__":
    key = jax.random.PRNGKey(0)
    N, Ch, Co, H, W = 2, 8, 16, 16, 16
    layers = 3                      # 2 x (upsample=False) + 1 x (upsample=True)

    def make_bn(k, c):
        k1, k2, k3, k4 = jax.random.split(k, 4)
        return (1.0 + 0.1 * jax.random.normal(k1, (c,), jnp.float32),
                0.1 * jax.random.normal(k2, (c,), jnp.float32),
                0.1 * jax.random.normal(k3, (c,), jnp.float32),
                1.0 + 0.1 * jax.random.uniform(k4, (c,), jnp.float32))

    keys = iter(jax.random.split(key, 32))
    x = jax.random.normal(next(keys), (N, Ch, H, W), jnp.float32)

    noup_params = []
    for _ in range(layers - 1):
        noup_params.append((
            make_bn(next(keys), Ch),
            0.2 * jax.random.normal(next(keys), (Ch, Ch, 3, 3), jnp.float32),
            make_bn(next(keys), Ch),
            0.2 * jax.random.normal(next(keys), (Ch, Ch, 3, 3), jnp.float32),
        ))
    up_params = (
        make_bn(next(keys), Ch),
        0.2 * jax.random.normal(next(keys), (Ch, Ch, 3, 3), jnp.float32),
        make_bn(next(keys), Ch),
        0.2 * jax.random.normal(next(keys), (Ch, Co, 3, 3), jnp.float32),    # ConvT 3x3
        make_bn(next(keys), Ch),
        0.2 * jax.random.normal(next(keys), (Ch, Co, 1, 1), jnp.float32),    # ConvT 1x1
    )

    out = decoder_residual_block(x, noup_params, up_params)
    out = jax.block_until_ready(out)
    assert out.shape == (N, Co, 2 * H, 2 * W), out.shape

    ref = _reference_block(x, noup_params, up_params)
    np.testing.assert_allclose(np.asarray(out), np.asarray(ref), rtol=2e-3, atol=2e-3)
    print("KERNEL_OK")
</pallas_src>

<mosaic_0001>
module attributes {stable_mosaic.version = 11 : i64} {
  func.func @_block_kernel(%arg0: i32, %arg1: memref<1x8x256xf32, #tpu.memory_space<vmem>>, %arg2: memref<2x8x72xf32, #tpu.memory_space<vmem>>, %arg3: memref<2x8x72xf32, #tpu.memory_space<vmem>>, %arg4: memref<2x3x8x1xf32, #tpu.memory_space<vmem>>, %arg5: memref<8x72xf32, #tpu.memory_space<vmem>>, %arg6: memref<64x32xf32, #tpu.memory_space<vmem>>, %arg7: memref<16x8xf32, #tpu.memory_space<vmem>>, %arg8: memref<5x8x1xf32, #tpu.memory_space<vmem>>, %arg9: memref<1x4x16x256xf32, #tpu.memory_space<vmem>>, %arg10: memref<8x290xf32, #tpu.memory_space<vmem>>) attributes {dimension_semantics = [#tpu.dimension_semantics<parallel>], iteration_bounds = array<i64: 2>, scalar_prefetch = 0 : i64, scratch_operands = 1 : i64, tpu.core_type = #tpu.core_type<tc>, window_params = [{transform_indices = @transform_0, window_bounds = array<i64: 1, 8, 256>}, {pipeline_mode = #tpu.pipeline_mode<synchronous>, transform_indices = @transform_1, window_bounds = array<i64: 2, 8, 72>}, {pipeline_mode = #tpu.pipeline_mode<synchronous>, transform_indices = @transform_2, window_bounds = array<i64: 2, 8, 72>}, {pipeline_mode = #tpu.pipeline_mode<synchronous>, transform_indices = @transform_3, window_bounds = array<i64: 2, 3, 8, 1>}, {pipeline_mode = #tpu.pipeline_mode<synchronous>, transform_indices = @transform_4, window_bounds = array<i64: 8, 72>}, {pipeline_mode = #tpu.pipeline_mode<synchronous>, transform_indices = @transform_5, window_bounds = array<i64: 64, 32>}, {pipeline_mode = #tpu.pipeline_mode<synchronous>, transform_indices = @transform_6, window_bounds = array<i64: 16, 8>}, {pipeline_mode = #tpu.pipeline_mode<synchronous>, transform_indices = @transform_7, window_bounds = array<i64: 5, 8, 1>}, {transform_indices = @transform_8, window_bounds = array<i64: 1, 4, 16, 256>}]} {
    %0 = tpu.iota {dimensions = array<i32: 1>} : vector<1x256xi32>
    %c15_i32 = arith.constant 15 : i32
    %1 = vector.broadcast %c15_i32 : i32 to vector<1x256xi32>
    %2 = arith.andi %0, %1 : vector<1x256xi32>
    %c0_i32 = arith.constant 0 : i32
    %3 = vector.broadcast %c0_i32 : i32 to vector<1x256xi32>
    %4 = arith.cmpi ne, %2, %3 : vector<1x256xi32>
    %5 = arith.extui %4 : vector<1x256xi1> to vector<1x256xi32>
    %6 = arith.sitofp %5 : vector<1x256xi32> to vector<1x256xf32>
    %c15_i32_0 = arith.constant 15 : i32
    %7 = vector.broadcast %c15_i32_0 : i32 to vector<1x256xi32>
    %8 = arith.cmpi ne, %2, %7 : vector<1x256xi32>
    %9 = arith.extui %8 : vector<1x256xi1> to vector<1x256xi32>
    %10 = arith.sitofp %9 : vector<1x256xi32> to vector<1x256xf32>
    %cst = arith.constant 0.000000e+00 : f32
    %11 = vector.broadcast %cst : f32 to vector<8x17xf32>
    %c0 = arith.constant 0 : index
    %c0_1 = arith.constant 0 : index
    %12 = vector.load %arg10[%c0, %c0_1] : memref<8x290xf32, #tpu.memory_space<vmem>>, vector<8x17xf32>
    tpu.vector_store %arg10[%c0, %c0_1], %11 {strides = array<i32>} : memref<8x290xf32, #tpu.memory_space<vmem>>, vector<8x17xf32>,
    %cst_2 = arith.constant 0.000000e+00 : f32
    %13 = vector.broadcast %cst_2 : f32 to vector<8x17xf32>
    %c0_3 = arith.constant 0 : index
    %c273 = arith.constant 273 : index
    %14 = vector.load %arg10[%c0_3, %c273] : memref<8x290xf32, #tpu.memory_space<vmem>>, vector<8x17xf32>
    tpu.vector_store %arg10[%c0_3, %c273], %13 {strides = array<i32>} : memref<8x290xf32, #tpu.memory_space<vmem>>, vector<8x17xf32>,
    %c0_4 = arith.constant 0 : index
    %c0_5 = arith.constant 0 : index
    %c0_6 = arith.constant 0 : index
    %15 = vector.load %arg1[%c0_4, %c0_5, %c0_6] : memref<1x8x256xf32, #tpu.memory_space<vmem>>, vector<1x8x256xf32>
    %16 = vector.shape_cast %15 : vector<1x8x256xf32> to vector<8x256xf32>
    %c0_7 = arith.constant 0 : index
    %c0_8 = arith.constant 0 : index
    %c0_9 = arith.constant 0 : index
    %c0_10 = arith.constant 0 : index
    %17 = vector.load %arg4[%c0_7, %c0_8, %c0_9, %c0_10] : memref<2x3x8x1xf32, #tpu.memory_space<vmem>>, vector<1x1x8x1xf32>
    %18 = vector.shape_cast %17 : vector<1x1x8x1xf32> to vector<8x1xf32>
    %c0_11 = arith.constant 0 : index
    %c1 = arith.constant 1 : index
    %c0_12 = arith.constant 0 : index
    %c0_13 = arith.constant 0 : index
    %19 = vector.load %arg4[%c0_11, %c1, %c0_12, %c0_13] : memref<2x3x8x1xf32, #tpu.memory_space<vmem>>, vector<1x1x8x1xf32>
    %20 = vector.shape_cast %19 : vector<1x1x8x1xf32> to vector<8x1xf32>
    %c0_14 = arith.constant 0 : index
    %c2 = arith.constant 2 : index
    %c0_15 = arith.constant 0 : index
    %c0_16 = arith.constant 0 : index
    %21 = vector.load %arg4[%c0_14, %c2, %c0_15, %c0_16] : memref<2x3x8x1xf32, #tpu.memory_space<vmem>>, vector<1x1x8x1xf32>
    %22 = vector.shape_cast %21 : vector<1x1x8x1xf32> to vector<8x1xf32>
    %23 = vector.broadcast %18 : vector<8x1xf32> to vector<8x256xf32>
    %24 = arith.mulf %16, %23 : vector<8x256xf32>
    %25 = vector.broadcast %20 : vector<8x1xf32> to vector<8x256xf32>
    %26 = arith.addf %24, %25 : vector<8x256xf32>
    %cst_17 = arith.constant 0.000000e+00 : f32
    %27 = vector.broadcast %cst_17 : f32 to vector<8x256xf32>
    %28 = arith.maximumf %26, %27 : vector<8x256xf32>
    %c0_18 = arith.constant 0 : index
    %c17 = arith.constant 17 : index
    %29 = vector.load %arg10[%c0_18, %c17] : memref<8x290xf32, #tpu.memory_space<vmem>>, vector<8x256xf32>
    tpu.vector_store %arg10[%c0_18, %c17], %28 {strides = array<i32>} : memref<8x290xf32, #tpu.memory_space<vmem>>, vector<8x256xf32>,
    %c0_19 = arith.constant 0 : index
    %c0_20 = arith.constant 0 : index
    %c0_21 = arith.constant 0 : index
    %30 = vector.load %arg2[%c0_19, %c0_20, %c0_21] : memref<2x8x72xf32, #tpu.memory_space<vmem>>, vector<1x8x72xf32>
    %31 = vector.shape_cast %30 : vector<1x8x72xf32> to vector<8x72xf32>
    %c0_22 = arith.constant 0 : index
    %c0_23 = arith.constant 0 : index
    %32 = vector.load %arg10[%c0_22, %c0_23] : memref<8x290xf32, #tpu.memory_space<vmem>>, vector<8x256xf32>
    %33 = vector.broadcast %6 : vector<1x256xf32> to vector<8x256xf32>
    %34 = arith.mulf %32, %33 : vector<8x256xf32>
    %c0_24 = arith.constant 0 : index
    %c1_25 = arith.constant 1 : index
    %35 = vector.load %arg10[%c0_24, %c1_25] : memref<8x290xf32, #tpu.memory_space<vmem>>, vector<8x256xf32>
    %c0_26 = arith.constant 0 : index
    %c2_27 = arith.constant 2 : index
    %36 = vector.load %arg10[%c0_26, %c2_27] : memref<8x290xf32, #tpu.memory_space<vmem>>, vector<8x256xf32>
    %37 = vector.broadcast %10 : vector<1x256xf32> to vector<8x256xf32>
    %38 = arith.mulf %36, %37 : vector<8x256xf32>
    %c0_28 = arith.constant 0 : index
    %c16 = arith.constant 16 : index
    %39 = vector.load %arg10[%c0_28, %c16] : memref<8x290xf32, #tpu.memory_space<vmem>>, vector<8x256xf32>
    %40 = vector.broadcast %6 : vector<1x256xf32> to vector<8x256xf32>
    %41 = arith.mulf %39, %40 : vector<8x256xf32>
    %c0_29 = arith.constant 0 : index
    %c17_30 = arith.constant 17 : index
    %42 = vector.load %arg10[%c0_29, %c17_30] : memref<8x290xf32, #tpu.memory_space<vmem>>, vector<8x256xf32>
    %c0_31 = arith.constant 0 : index
    %c18 = arith.constant 18 : index
    %43 = vector.load %arg10[%c0_31, %c18] : memref<8x290xf32, #tpu.memory_space<vmem>>, vector<8x256xf32>
    %44 = vector.broadcast %10 : vector<1x256xf32> to vector<8x256xf32>
    %45 = arith.mulf %43, %44 : vector<8x256xf32>
    %c0_32 = arith.constant 0 : index
    %c32 = arith.constant 32 : index
    %46 = vector.load %arg10[%c0_32, %c32] : memref<8x290xf32, #tpu.memory_space<vmem>>, vector<8x256xf32>
    %47 = vector.broadcast %6 : vector<1x256xf32> to vector<8x256xf32>
    %48 = arith.mulf %46, %47 : vector<8x256xf32>
    %c0_33 = arith.constant 0 : index
    %c33 = arith.constant 33 : index
    %49 = vector.load %arg10[%c0_33, %c33] : memref<8x290xf32, #tpu.memory_space<vmem>>, vector<8x256xf32>
    %c0_34 = arith.constant 0 : index
    %c34 = arith.constant 34 : index
    %50 = vector.load %arg10[%c0_34, %c34] : memref<8x290xf32, #tpu.memory_space<vmem>>, vector<8x256xf32>
    %51 = vector.broadcast %10 : vector<1x256xf32> to vector<8x256xf32>
    %52 = arith.mulf %50, %51 : vector<8x256xf32>
    %53 = tpu.concatenate %34, %35, %38, %41, %42, %45, %48, %49, %52 in 0 : vector<8x256xf32>, vector<8x256xf32>, vector<8x256xf32>, vector<8x256xf32>, vector<8x256xf32>, vector<8x256xf32>, vector<8x256xf32>, vector<8x256xf32>, vector<8x256xf32> -> vector<72x256xf32>
    %cst_35 = arith.constant dense<0.000000e+00> : vector<8x256xf32>
    %54 = tpu.matmul %31, %53, %cst_35 {dimension_numbers = #tpu.dot_dimension_numbers<[1], [0], [0], [1], [0, 0, 1, 1], [], []>} : vector<8x72xf32>, vector<72x256xf32>, vector<8x256xf32> -> vector<8x256xf32>
    %55 = vector.broadcast %22 : vector<8x1xf32> to vector<8x256xf32>
    %56 = arith.addf %54, %55 : vector<8x256xf32>
    %cst_36 = arith.constant 0.000000e+00 : f32
    %57 = vector.broadcast %cst_36 : f32 to vector<8x256xf32>
    %58 = arith.maximumf %56, %57 : vector<8x256xf32>
    %c0_37 = arith.constant 0 : index
    %c17_38 = arith.constant 17 : index
    %59 = vector.load %arg10[%c0_37, %c17_38] : memref<8x290xf32, #tpu.memory_space<vmem>>, vector<8x256xf32>
    tpu.vector_store %arg10[%c0_37, %c17_38], %58 {strides = array<i32>} : memref<8x290xf32, #tpu.memory_space<vmem>>, vector<8x256xf32>,
    %c0_39 = arith.constant 0 : index
    %c0_40 = arith.constant 0 : index
    %c0_41 = arith.constant 0 : index
    %60 = vector.load %arg3[%c0_39, %c0_40, %c0_41] : memref<2x8x72xf32, #tpu.memory_space<vmem>>, vector<1x8x72xf32>
    %61 = vector.shape_cast %60 : vector<1x8x72xf32> to vector<8x72xf32>
    %c0_42 = arith.constant 0 : index
    %c0_43 = arith.constant 0 : index
    %62 = vector.load %arg10[%c0_42, %c0_43] : memref<8x290xf32, #tpu.memory_space<vmem>>, vector<8x256xf32>
    %63 = vector.broadcast %6 : vector<1x256xf32> to vector<8x256xf32>
    %64 = arith.mulf %62, %63 : vector<8x256xf32>
    %c0_44 = arith.constant 0 : index
    %c1_45 = arith.constant 1 : index
    %65 = vector.load %arg10[%c0_44, %c1_45] : memref<8x290xf32, #tpu.memory_space<vmem>>, vector<8x256xf32>
    %c0_46 = arith.constant 0 : index
    %c2_47 = arith.constant 2 : index
    %66 = vector.load %arg10[%c0_46, %c2_47] : memref<8x290xf32, #tpu.memory_space<vmem>>, vector<8x256xf32>
    %67 = vector.broadcast %10 : vector<1x256xf32> to vector<8x256xf32>
    %68 = arith.mulf %66, %67 : vector<8x256xf32>
    %c0_48 = arith.constant 0 : index
    %c16_49 = arith.constant 16 : index
    %69 = vector.load %arg10[%c0_48, %c16_49] : memref<8x290xf32, #tpu.memory_space<vmem>>, vector<8x256xf32>
    %70 = vector.broadcast %6 : vector<1x256xf32> to vector<8x256xf32>
    %71 = arith.mulf %69, %70 : vector<8x256xf32>
    %c0_50 = arith.constant 0 : index
    %c17_51 = arith.constant 17 : index
    %72 = vector.load %arg10[%c0_50, %c17_51] : memref<8x290xf32, #tpu.memory_space<vmem>>, vector<8x256xf32>
    %c0_52 = arith.constant 0 : index
    %c18_53 = arith.constant 18 : index
    %73 = vector.load %arg10[%c0_52, %c18_53] : memref<8x290xf32, #tpu.memory_space<vmem>>, vector<8x256xf32>
    %74 = vector.broadcast %10 : vector<1x256xf32> to vector<8x256xf32>
    %75 = arith.mulf %73, %74 : vector<8x256xf32>
    %c0_54 = arith.constant 0 : index
    %c32_55 = arith.constant 32 : index
    %76 = vector.load %arg10[%c0_54, %c32_55] : memref<8x290xf32, #tpu.memory_space<vmem>>, vector<8x256xf32>
    %77 = vector.broadcast %6 : vector<1x256xf32> to vector<8x256xf32>
    %78 = arith.mulf %76, %77 : vector<8x256xf32>
    %c0_56 = arith.constant 0 : index
    %c33_57 = arith.constant 33 : index
    %79 = vector.load %arg10[%c0_56, %c33_57] : memref<8x290xf32, #tpu.memory_space<vmem>>, vector<8x256xf32>
    %c0_58 = arith.constant 0 : index
    %c34_59 = arith.constant 34 : index
    %80 = vector.load %arg10[%c0_58, %c34_59] : memref<8x290xf32, #tpu.memory_space<vmem>>, vector<8x256xf32>
    %81 = vector.broadcast %10 : vector<1x256xf32> to vector<8x256xf32>
    %82 = arith.mulf %80, %81 : vector<8x256xf32>
    %83 = tpu.concatenate %64, %65, %68, %71, %72, %75, %78, %79, %82 in 0 : vector<8x256xf32>, vector<8x256xf32>, vector<8x256xf32>, vector<8x256xf32>, vector<8x256xf32>, vector<8x256xf32>, vector<8x256xf32>, vector<8x256xf32>, vector<8x256xf32> -> vector<72x256xf32>
    %cst_60 = arith.constant dense<0.000000e+00> : vector<8x256xf32>
    %84 = tpu.matmul %61, %83, %cst_60 {dimension_numbers = #tpu.dot_dimension_numbers<[1], [0], [0], [1], [0, 0, 1, 1], [], []>} : vector<8x72xf32>, vector<72x256xf32>, vector<8x256xf32> -> vector<8x256xf32>
    %85 = arith.addf %84, %16 : vector<8x256xf32>
    %c1_61 = arith.constant 1 : index
    %c0_62 = arith.constant 0 : index
    %c0_63 = arith.constant 0 : index
    %c0_64 = arith.constant 0 : index
    %86 = vector.load %arg4[%c1_61, %c0_62, %c0_63, %c0_64] : memref<2x3x8x1xf32, #tpu.memory_space<vmem>>, vector<1x1x8x1xf32>
    %87 = vector.shape_cast %86 : vector<1x1x8x1xf32> to vector<8x1xf32>
    %c1_65 = arith.constant 1 : index
    %c1_66 = arith.constant 1 : index
    %c0_67 = arith.constant 0 : index
    %c0_68 = arith.constant 0 : index
    %88 = vector.load %arg4[%c1_65, %c1_66, %c0_67, %c0_68] : memref<2x3x8x1xf32, #tpu.memory_space<vmem>>, vector<1x1x8x1xf32>
    %89 = vector.shape_cast %88 : vector<1x1x8x1xf32> to vector<8x1xf32>
    %c1_69 = arith.constant 1 : index
    %c2_70 = arith.constant 2 : index
    %c0_71 = arith.constant 0 : index
    %c0_72 = arith.constant 0 : index
    %90 = vector.load %arg4[%c1_69, %c2_70, %c0_71, %c0_72] : memref<2x3x8x1xf32, #tpu.memory_space<vmem>>, vector<1x1x8x1xf32>
    %91 = vector.shape_cast %90 : vector<1x1x8x1xf32> to vector<8x1xf32>
    %92 = vector.broadcast %87 : vector<8x1xf32> to vector<8x256xf32>
    %93 = arith.mulf %85, %92 : vector<8x256xf32>
    %94 = vector.broadcast %89 : vector<8x1xf32> to vector<8x256xf32>
    %95 = arith.addf %93, %94 : vector<8x256xf32>
    %cst_73 = arith.constant 0.000000e+00 : f32
    %96 = vector.broadcast %cst_73 : f32 to vector<8x256xf32>
    %97 = arith.maximumf %95, %96 : vector<8x256xf32>
    %c0_74 = arith.constant 0 : index
    %c17_75 = arith.constant 17 : index
    %98 = vector.load %arg10[%c0_74, %c17_75] : memref<8x290xf32, #tpu.memory_space<vmem>>, vector<8x256xf32>
    tpu.vector_store %arg10[%c0_74, %c17_75], %97 {strides = array<i32>} : memref<8x290xf32, #tpu.memory_space<vmem>>, vector<8x256xf32>,
    %c1_76 = arith.constant 1 : index
    %c0_77 = arith.constant 0 : index
    %c0_78 = arith.constant 0 : index
    %99 = vector.load %arg2[%c1_76, %c0_77, %c0_78] : memref<2x8x72xf32, #tpu.memory_space<vmem>>, vector<1x8x72xf32>
    %100 = vector.shape_cast %99 : vector<1x8x72xf32> to vector<8x72xf32>
    %c0_79 = arith.constant 0 : index
    %c0_80 = arith.constant 0 : index
    %101 = vector.load %arg10[%c0_79, %c0_80] : memref<8x290xf32, #tpu.memory_space<vmem>>, vector<8x256xf32>
    %102 = vector.broadcast %6 : vector<1x256xf32> to vector<8x256xf32>
    %103 = arith.mulf %101, %102 : vector<8x256xf32>
    %c0_81 = arith.constant 0 : index
    %c1_82 = arith.constant 1 : index
    %104 = vector.load %arg10[%c0_81, %c1_82] : memref<8x290xf32, #tpu.memory_space<vmem>>, vector<8x256xf32>
    %c0_83 = arith.constant 0 : index
    %c2_84 = arith.constant 2 : index
    %105 = vector.load %arg10[%c0_83, %c2_84] : memref<8x290xf32, #tpu.memory_space<vmem>>, vector<8x256xf32>
    %106 = vector.broadcast %10 : vector<1x256xf32> to vector<8x256xf32>
    %107 = arith.mulf %105, %106 : vector<8x256xf32>
    %c0_85 = arith.constant 0 : index
    %c16_86 = arith.constant 16 : index
    %108 = vector.load %arg10[%c0_85, %c16_86] : memref<8x290xf32, #tpu.memory_space<vmem>>, vector<8x256xf32>
    %109 = vector.broadcast %6 : vector<1x256xf32> to vector<8x256xf32>
    %110 = arith.mulf %108, %109 : vector<8x256xf32>
    %c0_87 = arith.constant 0 : index
    %c17_88 = arith.constant 17 : index
    %111 = vector.load %arg10[%c0_87, %c17_88] : memref<8x290xf32, #tpu.memory_space<vmem>>, vector<8x256xf32>
    %c0_89 = arith.constant 0 : index
    %c18_90 = arith.constant 18 : index
    %112 = vector.load %arg10[%c0_89, %c18_90] : memref<8x290xf32, #tpu.memory_space<vmem>>, vector<8x256xf32>
    %113 = vector.broadcast %10 : vector<1x256xf32> to vector<8x256xf32>
    %114 = arith.mulf %112, %113 : vector<8x256xf32>
    %c0_91 = arith.constant 0 : index
    %c32_92 = arith.constant 32 : index
    %115 = vector.load %arg10[%c0_91, %c32_92] : memref<8x290xf32, #tpu.memory_space<vmem>>, vector<8x256xf32>
    %116 = vector.broadcast %6 : vector<1x256xf32> to vector<8x256xf32>
    %117 = arith.mulf %115, %116 : vector<8x256xf32>
    %c0_93 = arith.constant 0 : index
    %c33_94 = arith.constant 33 : index
    %118 = vector.load %arg10[%c0_93, %c33_94] : memref<8x290xf32, #tpu.memory_space<vmem>>, vector<8x256xf32>
    %c0_95 = arith.constant 0 : index
    %c34_96 = arith.constant 34 : index
    %119 = vector.load %arg10[%c0_95, %c34_96] : memref<8x290xf32, #tpu.memory_space<vmem>>, vector<8x256xf32>
    %120 = vector.broadcast %10 : vector<1x256xf32> to vector<8x256xf32>
    %121 = arith.mulf %119, %120 : vector<8x256xf32>
    %122 = tpu.concatenate %103, %104, %107, %110, %111, %114, %117, %118, %121 in 0 : vector<8x256xf32>, vector<8x256xf32>, vector<8x256xf32>, vector<8x256xf32>, vector<8x256xf32>, vector<8x256xf32>, vector<8x256xf32>, vector<8x256xf32>, vector<8x256xf32> -> vector<72x256xf32>
    %cst_97 = arith.constant dense<0.000000e+00> : vector<8x256xf32>
    %123 = tpu.matmul %100, %122, %cst_97 {dimension_numbers = #tpu.dot_dimension_numbers<[1], [0], [0], [1], [0, 0, 1, 1], [], []>} : vector<8x72xf32>, vector<72x256xf32>, vector<8x256xf32> -> vector<8x256xf32>
    %124 = vector.broadcast %91 : vector<8x1xf32> to vector<8x256xf32>
    %125 = arith.addf %123, %124 : vector<8x256xf32>
    %cst_98 = arith.constant 0.000000e+00 : f32
    %126 = vector.broadcast %cst_98 : f32 to vector<8x256xf32>
    %127 = arith.maximumf %125, %126 : vector<8x256xf32>
    %c0_99 = arith.constant 0 : index
    %c17_100 = arith.constant 17 : index
    %128 = vector.load %arg10[%c0_99, %c17_100] : memref<8x290xf32, #tpu.memory_space<vmem>>, vector<8x256xf32>
    tpu.vector_store %arg10[%c0_99, %c17_100], %127 {strides = array<i32>} : memref<8x290xf32, #tpu.memory_space<vmem>>, vector<8x256xf32>,
    %c1_101 = arith.constant 1 : index
    %c0_102 = arith.constant 0 : index
    %c0_103 = arith.constant 0 : index
    %129 = vector.load %arg3[%c1_101, %c0_102, %c0_103] : memref<2x8x72xf32, #tpu.memory_space<vmem>>, vector<1x8x72xf32>
    %130 = vector.shape_cast %129 : vector<1x8x72xf32> to vector<8x72xf32>
    %c0_104 = arith.constant 0 : index
    %c0_105 = arith.constant 0 : index
    %131 = vector.load %arg10[%c0_104, %c0_105] : memref<8x290xf32, #tpu.memory_space<vmem>>, vector<8x256xf32>
    %132 = vector.broadcast %6 : vector<1x256xf32> to vector<8x256xf32>
    %133 = arith.mulf %131, %132 : vector<8x256xf32>
    %c0_106 = arith.constant 0 : index
    %c1_107 = arith.constant 1 : index
    %134 = vector.load %arg10[%c0_106, %c1_107] : memref<8x290xf32, #tpu.memory_space<vmem>>, vector<8x256xf32>
    %c0_108 = arith.constant 0 : index
    %c2_109 = arith.constant 2 : index
    %135 = vector.load %arg10[%c0_108, %c2_109] : memref<8x290xf32, #tpu.memory_space<vmem>>, vector<8x256xf32>
    %136 = vector.broadcast %10 : vector<1x256xf32> to vector<8x256xf32>
    %137 = arith.mulf %135, %136 : vector<8x256xf32>
    %c0_110 = arith.constant 0 : index
    %c16_111 = arith.constant 16 : index
    %138 = vector.load %arg10[%c0_110, %c16_111] : memref<8x290xf32, #tpu.memory_space<vmem>>, vector<8x256xf32>
    %139 = vector.broadcast %6 : vector<1x256xf32> to vector<8x256xf32>
    %140 = arith.mulf %138, %139 : vector<8x256xf32>
    %c0_112 = arith.constant 0 : index
    %c17_113 = arith.constant 17 : index
    %141 = vector.load %arg10[%c0_112, %c17_113] : memref<8x290xf32, #tpu.memory_space<vmem>>, vector<8x256xf32>
    %c0_114 = arith.constant 0 : index
    %c18_115 = arith.constant 18 : index
    %142 = vector.load %arg10[%c0_114, %c18_115] : memref<8x290xf32, #tpu.memory_space<vmem>>, vector<8x256xf32>
    %143 = vector.broadcast %10 : vector<1x256xf32> to vector<8x256xf32>
    %144 = arith.mulf %142, %143 : vector<8x256xf32>
    %c0_116 = arith.constant 0 : index
    %c32_117 = arith.constant 32 : index
    %145 = vector.load %arg10[%c0_116, %c32_117] : memref<8x290xf32, #tpu.memory_space<vmem>>, vector<8x256xf32>
    %146 = vector.broadcast %6 : vector<1x256xf32> to vector<8x256xf32>
    %147 = arith.mulf %145, %146 : vector<8x256xf32>
    %c0_118 = arith.constant 0 : index
    %c33_119 = arith.constant 33 : index
    %148 = vector.load %arg10[%c0_118, %c33_119] : memref<8x290xf32, #tpu.memory_space<vmem>>, vector<8x256xf32>
    %c0_120 = arith.constant 0 : index
    %c34_121 = arith.constant 34 : index
    %149 = vector.load %arg10[%c0_120, %c34_121] : memref<8x290xf32, #tpu.memory_space<vmem>>, vector<8x256xf32>
    %150 = vector.broadcast %10 : vector<1x256xf32> to vector<8x256xf32>
    %151 = arith.mulf %149, %150 : vector<8x256xf32>
    %152 = tpu.concatenate %133, %134, %137, %140, %141, %144, %147, %148, %151 in 0 : vector<8x256xf32>, vector<8x256xf32>, vector<8x256xf32>, vector<8x256xf32>, vector<8x256xf32>, vector<8x256xf32>, vector<8x256xf32>, vector<8x256xf32>, vector<8x256xf32> -> vector<72x256xf32>
    %cst_122 = arith.constant dense<0.000000e+00> : vector<8x256xf32>
    %153 = tpu.matmul %130, %152, %cst_122 {dimension_numbers = #tpu.dot_dimension_numbers<[1], [0], [0], [1], [0, 0, 1, 1], [], []>} : vector<8x72xf32>, vector<72x256xf32>, vector<8x256xf32> -> vector<8x256xf32>
    %154 = arith.addf %153, %85 : vector<8x256xf32>
    %c0_123 = arith.constant 0 : index
    %c0_124 = arith.constant 0 : index
    %c0_125 = arith.constant 0 : index
    %155 = vector.load %arg8[%c0_123, %c0_124, %c0_125] : memref<5x8x1xf32, #tpu.memory_space<vmem>>, vector<1x8x1xf32>
    %156 = vector.shape_cast %155 : vector<1x8x1xf32> to vector<8x1xf32>
    %c1_126 = arith.constant 1 : index
    %c0_127 = arith.constant 0 : index
    %c0_128 = arith.constant 0 : index
    %157 = vector.load %arg8[%c1_126, %c0_127, %c0_128] : memref<5x8x1xf32, #tpu.memory_space<vmem>>, vector<1x8x1xf32>
    %158 = vector.shape_cast %157 : vector<1x8x1xf32> to vector<8x1xf32>
    %c2_129 = arith.constant 2 : index
    %c0_130 = arith.constant 0 : index
    %c0_131 = arith.constant 0 : index
    %159 = vector.load %arg8[%c2_129, %c0_130, %c0_131] : memref<5x8x1xf32, #tpu.memory_space<vmem>>, vector<1x8x1xf32>
    %160 = vector.shape_cast %159 : vector<1x8x1xf32> to vector<8x1xf32>
    %c3 = arith.constant 3 : index
    %c0_132 = arith.constant 0 : index
    %c0_133 = arith.constant 0 : index
    %161 = vector.load %arg8[%c3, %c0_132, %c0_133] : memref<5x8x1xf32, #tpu.memory_space<vmem>>, vector<1x8x1xf32>
    %162 = vector.shape_cast %161 : vector<1x8x1xf32> to vector<8x1xf32>
    %c4 = arith.constant 4 : index
    %c0_134 = arith.constant 0 : index
    %c0_135 = arith.constant 0 : index
    %163 = vector.load %arg8[%c4, %c0_134, %c0_135] : memref<5x8x1xf32, #tpu.memory_space<vmem>>, vector<1x8x1xf32>
    %164 = vector.shape_cast %163 : vector<1x8x1xf32> to vector<8x1xf32>
    %165 = vector.broadcast %156 : vector<8x1xf32> to vector<8x256xf32>
    %166 = arith.mulf %154, %165 : vector<8x256xf32>
    %167 = vector.broadcast %158 : vector<8x1xf32> to vector<8x256xf32>
    %168 = arith.addf %166, %167 : vector<8x256xf32>
    %cst_136 = arith.constant 0.000000e+00 : f32
    %169 = vector.broadcast %cst_136 : f32 to vector<8x256xf32>
    %170 = arith.maximumf %168, %169 : vector<8x256xf32>
    %c0_137 = arith.constant 0 : index
    %c17_138 = arith.constant 17 : index
    %171 = vector.load %arg10[%c0_137, %c17_138] : memref<8x290xf32, #tpu.memory_space<vmem>>, vector<8x256xf32>
    tpu.vector_store %arg10[%c0_137, %c17_138], %170 {strides = array<i32>} : memref<8x290xf32, #tpu.memory_space<vmem>>, vector<8x256xf32>,
    %c0_139 = arith.constant 0 : index
    %c0_140 = arith.constant 0 : index
    %172 = vector.load %arg5[%c0_139, %c0_140] : memref<8x72xf32, #tpu.memory_space<vmem>>, vector<8x72xf32>
    %c0_141 = arith.constant 0 : index
    %c0_142 = arith.constant 0 : index
    %173 = vector.load %arg10[%c0_141, %c0_142] : memref<8x290xf32, #tpu.memory_space<vmem>>, vector<8x256xf32>
    %174 = vector.broadcast %6 : vector<1x256xf32> to vector<8x256xf32>
    %175 = arith.mulf %173, %174 : vector<8x256xf32>
    %c0_143 = arith.constant 0 : index
    %c1_144 = arith.constant 1 : index
    %176 = vector.load %arg10[%c0_143, %c1_144] : memref<8x290xf32, #tpu.memory_space<vmem>>, vector<8x256xf32>
    %c0_145 = arith.constant 0 : index
    %c2_146 = arith.constant 2 : index
    %177 = vector.load %arg10[%c0_145, %c2_146] : memref<8x290xf32, #tpu.memory_space<vmem>>, vector<8x256xf32>
    %178 = vector.broadcast %10 : vector<1x256xf32> to vector<8x256xf32>
    %179 = arith.mulf %177, %178 : vector<8x256xf32>
    %c0_147 = arith.constant 0 : index
    %c16_148 = arith.constant 16 : index
    %180 = vector.load %arg10[%c0_147, %c16_148] : memref<8x290xf32, #tpu.memory_space<vmem>>, vector<8x256xf32>
    %181 = vector.broadcast %6 : vector<1x256xf32> to vector<8x256xf32>
    %182 = arith.mulf %180, %181 : vector<8x256xf32>
    %c0_149 = arith.constant 0 : index
    %c17_150 = arith.constant 17 : index
    %183 = vector.load %arg10[%c0_149, %c17_150] : memref<8x290xf32, #tpu.memory_space<vmem>>, vector<8x256xf32>
    %c0_151 = arith.constant 0 : index
    %c18_152 = arith.constant 18 : index
    %184 = vector.load %arg10[%c0_151, %c18_152] : memref<8x290xf32, #tpu.memory_space<vmem>>, vector<8x256xf32>
    %185 = vector.broadcast %10 : vector<1x256xf32> to vector<8x256xf32>
    %186 = arith.mulf %184, %185 : vector<8x256xf32>
    %c0_153 = arith.constant 0 : index
    %c32_154 = arith.constant 32 : index
    %187 = vector.load %arg10[%c0_153, %c32_154] : memref<8x290xf32, #tpu.memory_space<vmem>>, vector<8x256xf32>
    %188 = vector.broadcast %6 : vector<1x256xf32> to vector<8x256xf32>
    %189 = arith.mulf %187, %188 : vector<8x256xf32>
    %c0_155 = arith.constant 0 : index
    %c33_156 = arith.constant 33 : index
    %190 = vector.load %arg10[%c0_155, %c33_156] : memref<8x290xf32, #tpu.memory_space<vmem>>, vector<8x256xf32>
    %c0_157 = arith.constant 0 : index
    %c34_158 = arith.constant 34 : index
    %191 = vector.load %arg10[%c0_157, %c34_158] : memref<8x290xf32, #tpu.memory_space<vmem>>, vector<8x256xf32>
    %192 = vector.broadcast %10 : vector<1x256xf32> to vector<8x256xf32>
    %193 = arith.mulf %191, %192 : vector<8x256xf32>
    %194 = tpu.concatenate %175, %176, %179, %182, %183, %186, %189, %190, %193 in 0 : vector<8x256xf32>, vector<8x256xf32>, vector<8x256xf32>, vector<8x256xf32>, vector<8x256xf32>, vector<8x256xf32>, vector<8x256xf32>, vector<8x256xf32>, vector<8x256xf32> -> vector<72x256xf32>
    %cst_159 = arith.constant dense<0.000000e+00> : vector<8x256xf32>
    %195 = tpu.matmul %172, %194, %cst_159 {dimension_numbers = #tpu.dot_dimension_numbers<[1], [0], [0], [1], [0, 0, 1, 1], [], []>} : vector<8x72xf32>, vector<72x256xf32>, vector<8x256xf32> -> vector<8x256xf32>
    %196 = vector.broadcast %160 : vector<8x1xf32> to vector<8x256xf32>
    %197 = arith.addf %195, %196 : vector<8x256xf32>
    %cst_160 = arith.constant 0.000000e+00 : f32
    %198 = vector.broadcast %cst_160 : f32 to vector<8x256xf32>
    %199 = arith.maximumf %197, %198 : vector<8x256xf32>
    %c0_161 = arith.constant 0 : index
    %c17_162 = arith.constant 17 : index
    %200 = vector.load %arg10[%c0_161, %c17_162] : memref<8x290xf32, #tpu.memory_space<vmem>>, vector<8x256xf32>
    tpu.vector_store %arg10[%c0_161, %c17_162], %199 {strides = array<i32>} : memref<8x290xf32, #tpu.memory_space<vmem>>, vector<8x256xf32>,
    %c0_163 = arith.constant 0 : index
    %c17_164 = arith.constant 17 : index
    %201 = vector.load %arg10[%c0_163, %c17_164] : memref<8x290xf32, #tpu.memory_space<vmem>>, vector<8x256xf32>
    %c0_165 = arith.constant 0 : index
    %c18_166 = arith.constant 18 : index
    %202 = vector.load %arg10[%c0_165, %c18_166] : memref<8x290xf32, #tpu.memory_space<vmem>>, vector<8x256xf32>
    %203 = vector.broadcast %10 : vector<1x256xf32> to vector<8x256xf32>
    %204 = arith.mulf %202, %203 : vector<8x256xf32>
    %c0_167 = arith.constant 0 : index
    %c33_168 = arith.constant 33 : index
    %205 = vector.load %arg10[%c0_167, %c33_168] : memref<8x290xf32, #tpu.memory_space<vmem>>, vector<8x256xf32>
    %c0_169 = arith.constant 0 : index
    %c34_170 = arith.constant 34 : index
    %206 = vector.load %arg10[%c0_169, %c34_170] : memref<8x290xf32, #tpu.memory_space<vmem>>, vector<8x256xf32>
    %207 = vector.broadcast %10 : vector<1x256xf32> to vector<8x256xf32>
    %208 = arith.mulf %206, %207 : vector<8x256xf32>
    %209 = tpu.concatenate %201, %204, %205, %208 in 0 : vector<8x256xf32>, vector<8x256xf32>, vector<8x256xf32>, vector<8x256xf32> -> vector<32x256xf32>
    %c0_171 = arith.constant 0 : index
    %c0_172 = arith.constant 0 : index
    %210 = vector.load %arg6[%c0_171, %c0_172] : memref<64x32xf32, #tpu.memory_space<vmem>>, vector<64x32xf32>
    %cst_173 = arith.constant dense<0.000000e+00> : vector<64x256xf32>
    %211 = tpu.matmul %210, %209, %cst_173 {dimension_numbers = #tpu.dot_dimension_numbers<[1], [0], [0], [1], [0, 0, 1, 1], [], []>} : vector<64x32xf32>, vector<32x256xf32>, vector<64x256xf32> -> vector<64x256xf32>
    %212 = vector.broadcast %162 : vector<8x1xf32> to vector<8x256xf32>
    %213 = arith.mulf %154, %212 : vector<8x256xf32>
    %214 = vector.broadcast %164 : vector<8x1xf32> to vector<8x256xf32>
    %215 = arith.addf %213, %214 : vector<8x256xf32>
    %cst_174 = arith.constant 0.000000e+00 : f32
    %216 = vector.broadcast %cst_174 : f32 to vector<8x256xf32>
    %217 = arith.maximumf %215, %216 : vector<8x256xf32>
    %c0_175 = arith.constant 0 : index
    %c0_176 = arith.constant 0 : index
    %218 = vector.load %arg7[%c0_175, %c0_176] : memref<16x8xf32, #tpu.memory_space<vmem>>, vector<16x8xf32>
    %cst_177 = arith.constant dense<0.000000e+00> : vector<16x256xf32>
    %219 = tpu.matmul %218, %217, %cst_177 {dimension_numbers = #tpu.dot_dimension_numbers<[1], [0], [0], [1], [0, 0, 1, 1], [], []>} : vector<16x8xf32>, vector<8x256xf32>, vector<16x256xf32> -> vector<16x256xf32>
    %220 = vector.extract_strided_slice %211 {offsets = [0, 0], sizes = [16, 256], strides = [1, 1]} : vector<64x256xf32> to vector<16x256xf32>
    %221 = arith.addf %220, %219 : vector<16x256xf32>
    %c0_178 = arith.constant 0 : index
    %c0_179 = arith.constant 0 : index
    %c0_180 = arith.constant 0 : index
    %c0_181 = arith.constant 0 : index
    %222 = vector.load %arg9[%c0_178, %c0_179, %c0_180, %c0_181] : memref<1x4x16x256xf32, #tpu.memory_space<vmem>>, vector<1x1x16x256xf32>
    %223 = vector.shape_cast %222 : vector<1x1x16x256xf32> to vector<16x256xf32>
    %224 = vector.shape_cast %221 : vector<16x256xf32> to vector<1x1x16x256xf32>
    tpu.vector_store %arg9[%c0_178, %c0_179, %c0_180, %c0_181], %224 {strides = array<i32>} : memref<1x4x16x256xf32, #tpu.memory_space<vmem>>, vector<1x1x16x256xf32>,
    %225 = vector.extract_strided_slice %211 {offsets = [16, 0], sizes = [16, 256], strides = [1, 1]} : vector<64x256xf32> to vector<16x256xf32>
    %c0_182 = arith.constant 0 : index
    %c1_183 = arith.constant 1 : index
    %c0_184 = arith.constant 0 : index
    %c0_185 = arith.constant 0 : index
    %226 = vector.load %arg9[%c0_182, %c1_183, %c0_184, %c0_185] : memref<1x4x16x256xf32, #tpu.memory_space<vmem>>, vector<1x1x16x256xf32>
    %227 = vector.shape_cast %226 : vector<1x1x16x256xf32> to vector<16x256xf32>
    %228 = vector.shape_cast %225 : vector<16x256xf32> to vector<1x1x16x256xf32>
    tpu.vector_store %arg9[%c0_182, %c1_183, %c0_184, %c0_185], %228 {strides = array<i32>} : memref<1x4x16x256xf32, #tpu.memory_space<vmem>>, vector<1x1x16x256xf32>,
    %229 = vector.extract_strided_slice %211 {offsets = [32, 0], sizes = [16, 256], strides = [1, 1]} : vector<64x256xf32> to vector<16x256xf32>
    %c0_186 = arith.constant 0 : index
    %c2_187 = arith.constant 2 : index
    %c0_188 = arith.constant 0 : index
    %c0_189 = arith.constant 0 : index
    %230 = vector.load %arg9[%c0_186, %c2_187, %c0_188, %c0_189] : memref<1x4x16x256xf32, #tpu.memory_space<vmem>>, vector<1x1x16x256xf32>
    %231 = vector.shape_cast %230 : vector<1x1x16x256xf32> to vector<16x256xf32>
    %232 = vector.shape_cast %229 : vector<16x256xf32> to vector<1x1x16x256xf32>
    tpu.vector_store %arg9[%c0_186, %c2_187, %c0_188, %c0_189], %232 {strides = array<i32>} : memref<1x4x16x256xf32, #tpu.memory_space<vmem>>, vector<1x1x16x256xf32>,
    %233 = vector.extract_strided_slice %211 {offsets = [48, 0], sizes = [16, 256], strides = [1, 1]} : vector<64x256xf32> to vector<16x256xf32>
    %c0_190 = arith.constant 0 : index
    %c3_191 = arith.constant 3 : index
    %c0_192 = arith.constant 0 : index
    %c0_193 = arith.constant 0 : index
    %234 = vector.load %arg9[%c0_190, %c3_191, %c0_192, %c0_193] : memref<1x4x16x256xf32, #tpu.memory_space<vmem>>, vector<1x1x16x256xf32>
    %235 = vector.shape_cast %234 : vector<1x1x16x256xf32> to vector<16x256xf32>
    %236 = vector.shape_cast %233 : vector<16x256xf32> to vector<1x1x16x256xf32>
    tpu.vector_store %arg9[%c0_190, %c3_191, %c0_192, %c0_193], %236 {strides = array<i32>} : memref<1x4x16x256xf32, #tpu.memory_space<vmem>>, vector<1x1x16x256xf32>,
    return
  }
  func.func @transform_0(%arg0: i32) -> (i32, i32, i32) {
    %c0_i32 = arith.constant 0 : i32
    %c0_i32_0 = arith.constant 0 : i32
    %c0_i32_1 = arith.constant 0 : i32
    return %arg0, %c0_i32, %c0_i32_0 : i32, i32, i32
  }
  func.func @transform_1(%arg0: i32) -> (i32, i32, i32) {
    %c0_i32 = arith.constant 0 : i32
    %c0_i32_0 = arith.constant 0 : i32
    %c0_i32_1 = arith.constant 0 : i32
    %c0_i32_2 = arith.constant 0 : i32
    return %c0_i32, %c0_i32_0, %c0_i32_1 : i32, i32, i32
  }
  func.func @transform_2(%arg0: i32) -> (i32, i32, i32) {
    %c0_i32 = arith.constant 0 : i32
    %c0_i32_0 = arith.constant 0 : i32
    %c0_i32_1 = arith.constant 0 : i32
    %c0_i32_2 = arith.constant 0 : i32
    return %c0_i32, %c0_i32_0, %c0_i32_1 : i32, i32, i32
  }
  func.func @transform_3(%arg0: i32) -> (i32, i32, i32, i32) {
    %c0_i32 = arith.constant 0 : i32
    %c0_i32_0 = arith.constant 0 : i32
    %c0_i32_1 = arith.constant 0 : i32
    %c0_i32_2 = arith.constant 0 : i32
    %c0_i32_3 = arith.constant 0 : i32
    return %c0_i32, %c0_i32_0, %c0_i32_1, %c0_i32_2 : i32, i32, i32, i32
  }
  func.func @transform_4(%arg0: i32) -> (i32, i32) {
    %c0_i32 = arith.constant 0 : i32
    %c0_i32_0 = arith.constant 0 : i32
    %c0_i32_1 = arith.constant 0 : i32
    return %c0_i32, %c0_i32_0 : i32, i32
  }
  func.func @transform_5(%arg0: i32) -> (i32, i32) {
    %c0_i32 = arith.constant 0 : i32
    %c0_i32_0 = arith.constant 0 : i32
    %c0_i32_1 = arith.constant 0 : i32
    return %c0_i32, %c0_i32_0 : i32, i32
  }
  func.func @transform_6(%arg0: i32) -> (i32, i32) {
    %c0_i32 = arith.constant 0 : i32
    %c0_i32_0 = arith.constant 0 : i32
    %c0_i32_1 = arith.constant 0 : i32
    return %c0_i32, %c0_i32_0 : i32, i32
  }
  func.func @transform_7(%arg0: i32) -> (i32, i32, i32) {
    %c0_i32 = arith.constant 0 : i32
    %c0_i32_0 = arith.constant 0 : i32
    %c0_i32_1 = arith.constant 0 : i32
    %c0_i32_2 = arith.constant 0 : i32
    return %c0_i32, %c0_i32_0, %c0_i32_1 : i32, i32, i32
  }
  func.func @transform_8(%arg0: i32) -> (i32, i32, i32, i32) {
    %c0_i32 = arith.constant 0 : i32
    %c0_i32_0 = arith.constant 0 : i32
    %c0_i32_1 = arith.constant 0 : i32
    %c0_i32_2 = arith.constant 0 : i32
    return %arg0, %c0_i32, %c0_i32_0, %c0_i32_1 : i32, i32, i32, i32
  }
}

</mosaic_0001>

<llo_original>
// kernel: tpu_custom_call.1
$region0: #{tpu_custom_call.1}
  #allocation0 [shape = 'u32[]', space=smem, size = 0x4, offset = 0x4, fixed_abs, tag = 'smem constant byte address 0x4 - core index']
  #allocation1 [shape = 'u32[72,128]{1,0:T(1,128)}', space=vmem, size = 0x9000, scoped, tag = 'internal scratch']
  #allocation2 [shape = 'f32[8,290]{1,0:T(8,128)}', space=vmem, size = 0x3000, scoped, tag = 'scratch operand']
  %s0 = inlined_call_operand.vmem [shape: f32[2,8,256], index: 0, kind: input, shape index: {}]
  %s1 = inlined_call_operand.vmem [shape: f32[2,8,72], index: 1, kind: input, shape index: {}]
  %s2 = inlined_call_operand.vmem [shape: f32[2,8,72], index: 2, kind: input, shape index: {}]
  %s3 = inlined_call_operand.vmem [shape: f32[2,3,8,1], index: 3, kind: input, shape index: {}]
  %s4 = inlined_call_operand.vmem [shape: f32[8,72], index: 4, kind: input, shape index: {}]
  %s5 = inlined_call_operand.vmem [shape: f32[64,32], index: 5, kind: input, shape index: {}]
  %s6 = inlined_call_operand.vmem [shape: f32[16,8], index: 6, kind: input, shape index: {}]
  %s7 = inlined_call_operand.vmem [shape: f32[5,8,1], index: 7, kind: input, shape index: {}]
  %s8 = inlined_call_operand.hbm [shape: f32[2,4,16,256], index: 8, kind: output, shape index: {}]
  %s9 = sld [smem:[#allocation0]]
  $region65: #{tpu_custom_call.1} parent=0
    _
  %s11 = ssub.s32 1, %s9
  %s12 = scalar_select 0, %s11, %s9
  $region1: #{tpu_custom_call.1} parent=0
    #allocation3 [shape = 'u8[131072]{0}', space=vmem, size = 0x20000, scoped, tag = 'output window, operand 0']
    #allocation4 [shape = 's32[2]{0}', space=sflag, size = 0x8, scoped, tag = 'scoped memory for tpu_custom_call.1']
    %13 = vsyncpa [#allocation4], 0
    %s14 = scalar_lea.sflag [#allocation4], 1
    %15 = vsyncpa %s14, 0
    loop: start=0, step=1, limit=4
    $region2: #{tpu_custom_call.1} parent=1 // loop_pre_header
      _
    $region3: #{tpu_custom_call.1} parent=1 // loop_header
      %s17 = sphi 0, %s21
      %p18 = scmp.ge.s32.totalorder %s17, 4
      %s27 = sphi 0, %s29
      %s30 = sphi 0, %s27
      %s31 = sphi 0, %s30
      %s47 = sphi 0, %s31
      %s51 = sphi 0, %s51
      %s53 = sphi 0, %s51
      %s54 = sphi 0, %s53
      %s68 = sphi 0, %s54
      %s72 = sphi 0, %s72
      %s74 = sphi 0, %s72
      %s75 = sphi 0, %s74
      %s89 = sphi 0, %s75
      %s93 = sphi 0, %s93
      %s95 = sphi 0, %s93
      %s96 = sphi 0, %s95
      %s110 = sphi 0, %s96
      %s114 = sphi 0, %s114
      %s116 = sphi 0, %s114
      %s117 = sphi 0, %s116
      %s131 = sphi 0, %s117
      %s135 = sphi 0, %s135
      %s137 = sphi 0, %s135
      %s138 = sphi 0, %s137
      %s152 = sphi 0, %s138
      %s156 = sphi 0, %s156
      %s158 = sphi 0, %s156
      %s159 = sphi 0, %s158
      %s173 = sphi 0, %s159
      %s177 = sphi 0, %s177
      %s179 = sphi 0, %s177
      %s180 = sphi 0, %s179
      %s194 = sphi 0, %s180
      %s200 = sphi 0, %s202
      %s203 = sphi 0, %s200
      %s204 = sphi 0, %s203
      %s220 = sphi 0, %s204
    $region4: #{tpu_custom_call.1} parent=1 // loop_header_branch
      %20 = sbr.rel (%p18) target = $region8
    $region5: #{tpu_custom_call.1} parent=1 // loop_body
      %s22 = ssub.s32 %s17, 1
      %s23 = ssub.s32 %s17, 2
      %s24 = sadd.s32 %s17, 1
      %s25 = ssub.s32 %s17, %s24
      %p26 = scmp.eq.s32.totalorder %s25, 0
      %s28 = sadd.s32 %s27, 1
      %s29 = scalar_select %p26, %s27, %s28
      %p32 = pneg %p26
      %p33 = scmp.eq.s32.totalorder %s17, 1
      %p34 = por %p32, %p33
      %p35 = scmp.ne.s32.totalorder %s27, %s30
      %p36 = scmp.eq.s32.totalorder %s17, 0
      %p37 = por %p35, %p36
      %p38 = scmp.ne.s32.totalorder %s27, %s30
      %p39 = scmp.eq.s32.totalorder %s22, 1
      %p40 = por %p38, %p39
      %p41 = scmp.ne.s32.totalorder %s30, %s31
      %p42 = scmp.eq.s32.totalorder %s22, 0
      %p43 = por %p41, %p42
      %p44 = scmp.ne.s32.totalorder %s30, %s31
      %p45 = scmp.eq.s32.totalorder %s23, 1
      %p46 = por %p44, %p45
      %p48 = scmp.ne.s32.totalorder %s31, %s47
      %p49 = scmp.eq.s32.totalorder %s23, 0
      %p50 = por %p48, %p49
      %s52 = sadd.s32 %s51, 1
      %p55 = scmp.eq.s32.totalorder %s17, 1
      %p56 = scmp.ne.s32.totalorder %s51, %s53
      %p57 = scmp.eq.s32.totalorder %s17, 0
      %p58 = por %p56, %p57
      %p59 = scmp.ne.s32.totalorder %s51, %s53
      %p60 = scmp.eq.s32.totalorder %s22, 1
      %p61 = por %p59, %p60
      %p62 = scmp.ne.s32.totalorder %s53, %s54
      %p63 = scmp.eq.s32.totalorder %s22, 0
      %p64 = por %p62, %p63
      %p65 = scmp.ne.s32.totalorder %s53, %s54
      %p66 = scmp.eq.s32.totalorder %s23, 1
      %p67 = por %p65, %p66
      %p69 = scmp.ne.s32.totalorder %s54, %s68
      %p70 = scmp.eq.s32.totalorder %s23, 0
      %p71 = por %p69, %p70
      %s73 = sadd.s32 %s72, 1
      %p76 = scmp.eq.s32.totalorder %s17, 1
      %p77 = scmp.ne.s32.totalorder %s72, %s74
      %p78 = scmp.eq.s32.totalorder %s17, 0
      %p79 = por %p77, %p78
      %p80 = scmp.ne.s32.totalorder %s72, %s74
      %p81 = scmp.eq.s32.totalorder %s22, 1
      %p82 = por %p80, %p81
      %p83 = scmp.ne.s32.totalorder %s74, %s75
      %p84 = scmp.eq.s32.totalorder %s22, 0
      %p85 = por %p83, %p84
      %p86 = scmp.ne.s32.totalorder %s74, %s75
      %p87 = scmp.eq.s32.totalorder %s23, 1
      %p88 = por %p86, %p87
      %p90 = scmp.ne.s32.totalorder %s75, %s89
      %p91 = scmp.eq.s32.totalorder %s23, 0
      %p92 = por %p90, %p91
      %s94 = sadd.s32 %s93, 1
      %p97 = scmp.eq.s32.totalorder %s17, 1
      %p98 = scmp.ne.s32.totalorder %s93, %s95
      %p99 = scmp.eq.s32.totalorder %s17, 0
      %p100 = por %p98, %p99
      %p101 = scmp.ne.s32.totalorder %s93, %s95
      %p102 = scmp.eq.s32.totalorder %s22, 1
      %p103 = por %p101, %p102
      %p104 = scmp.ne.s32.totalorder %s95, %s96
      %p105 = scmp.eq.s32.totalorder %s22, 0
      %p106 = por %p104, %p105
      %p107 = scmp.ne.s32.totalorder %s95, %s96
      %p108 = scmp.eq.s32.totalorder %s23, 1
      %p109 = por %p107, %p108
      %p111 = scmp.ne.s32.totalorder %s96, %s110
      %p112 = scmp.eq.s32.totalorder %s23, 0
      %p113 = por %p111, %p112
      %s115 = sadd.s32 %s114, 1
      %p118 = scmp.eq.s32.totalorder %s17, 1
      %p119 = scmp.ne.s32.totalorder %s114, %s116
      %p120 = scmp.eq.s32.totalorder %s17, 0
      %p121 = por %p119, %p120
      %p122 = scmp.ne.s32.totalorder %s114, %s116
      %p123 = scmp.eq.s32.totalorder %s22, 1
      %p124 = por %p122, %p123
      %p125 = scmp.ne.s32.totalorder %s116, %s117
      %p126 = scmp.eq.s32.totalorder %s22, 0
      %p127 = por %p125, %p126
      %p128 = scmp.ne.s32.totalorder %s116, %s117
      %p129 = scmp.eq.s32.totalorder %s23, 1
      %p130 = por %p128, %p129
      %p132 = scmp.ne.s32.totalorder %s117, %s131
      %p133 = scmp.eq.s32.totalorder %s23, 0
      %p134 = por %p132, %p133
      %s136 = sadd.s32 %s135, 1
      %p139 = scmp.eq.s32.totalorder %s17, 1
      %p140 = scmp.ne.s32.totalorder %s135, %s137
      %p141 = scmp.eq.s32.totalorder %s17, 0
      %p142 = por %p140, %p141
      %p143 = scmp.ne.s32.totalorder %s135, %s137
      %p144 = scmp.eq.s32.totalorder %s22, 1
      %p145 = por %p143, %p144
      %p146 = scmp.ne.s32.totalorder %s137, %s138
      %p147 = scmp.eq.s32.totalorder %s22, 0
      %p148 = por %p146, %p147
      %p149 = scmp.ne.s32.totalorder %s137, %s138
      %p150 = scmp.eq.s32.totalorder %s23, 1
      %p151 = por %p149, %p150
      %p153 = scmp.ne.s32.totalorder %s138, %s152
      %p154 = scmp.eq.s32.totalorder %s23, 0
      %p155 = por %p153, %p154
      %s157 = sadd.s32 %s156, 1
      %p160 = scmp.eq.s32.totalorder %s17, 1
      %p161 = scmp.ne.s32.totalorder %s156, %s158
      %p162 = scmp.eq.s32.totalorder %s17, 0
      %p163 = por %p161, %p162
      %p164 = scmp.ne.s32.totalorder %s156, %s158
      %p165 = scmp.eq.s32.totalorder %s22, 1
      %p166 = por %p164, %p165
      %p167 = scmp.ne.s32.totalorder %s158, %s159
      %p168 = scmp.eq.s32.totalorder %s22, 0
      %p169 = por %p167, %p168
      %p170 = scmp.ne.s32.totalorder %s158, %s159
      %p171 = scmp.eq.s32.totalorder %s23, 1
      %p172 = por %p170, %p171
      %p174 = scmp.ne.s32.totalorder %s159, %s173
      %p175 = scmp.eq.s32.totalorder %s23, 0
      %p176 = por %p174, %p175
      %s178 = sadd.s32 %s177, 1
      %p181 = scmp.eq.s32.totalorder %s17, 1
      %p182 = scmp.ne.s32.totalorder %s177, %s179
      %p183 = scmp.eq.s32.totalorder %s17, 0
      %p184 = por %p182, %p183
      %p185 = scmp.ne.s32.totalorder %s177, %s179
      %p186 = scmp.eq.s32.totalorder %s22, 1
      %p187 = por %p185, %p186
      %p188 = scmp.ne.s32.totalorder %s179, %s180
      %p189 = scmp.eq.s32.totalorder %s22, 0
      %p190 = por %p188, %p189
      %p191 = scmp.ne.s32.totalorder %s179, %s180
      %p192 = scmp.eq.s32.totalorder %s23, 1
      %p193 = por %p191, %p192
      %p195 = scmp.ne.s32.totalorder %s180, %s194
      %p196 = scmp.eq.s32.totalorder %s23, 0
      %p197 = por %p195, %p196
      %s198 = ssub.s32 %s17, %s24
      %p199 = scmp.eq.s32.totalorder %s198, 0
      %s201 = sadd.s32 %s200, 1
      %s202 = scalar_select %p199, %s200, %s201
      %p205 = pneg %p199
      %p206 = scmp.eq.s32.totalorder %s17, 1
      %p207 = por %p205, %p206
      %p208 = scmp.ne.s32.totalorder %s200, %s203
      %p209 = scmp.eq.s32.totalorder %s17, 0
      %p210 = por %p208, %p209
      %p211 = scmp.ne.s32.totalorder %s200, %s203
      %p212 = scmp.eq.s32.totalorder %s22, 1
      %p213 = por %p211, %p212
      %p214 = scmp.ne.s32.totalorder %s203, %s204
      %p215 = scmp.eq.s32.totalorder %s22, 0
      %p216 = por %p214, %p215
      %p217 = scmp.ne.s32.totalorder %s203, %s204
      %p218 = scmp.eq.s32.totalorder %s23, 1
      %p219 = por %p217, %p218
      %p221 = scmp.ne.s32.totalorder %s204, %s220
      %p222 = scmp.eq.s32.totalorder %s23, 0
      %p223 = por %p221, %p222
      %p224 = scmp.le.s32.totalorder 1, %s17
      %p225 = scmp.lt.s32.totalorder %s17, 3
      %p226 = pnand %p224, %p225
      %p227 = pneg %p226
      // Predicated region
      $region9: #{tpu_custom_call.1} parent=5 // pred_check
        _
      $region10: #{tpu_custom_call.1} parent=5 // pred_check_branch
        %229 = sbr.rel (%p226) target = $region12
      $region11: #{tpu_custom_call.1} parent=5 // pred_region
        %s230 = ssub.s32 %s17, 1
        // Predicated region
        $region13: #{tpu_custom_call.1} parent=11 // pred_check
          %p231 = pneg %p64
        $region14: #{tpu_custom_call.1} parent=11 // pred_check_branch
          %233 = sbr.rel (%p231) target = $region16
        $region15: #{tpu_custom_call.1} parent=11 // pred_region
          _
        $region16: #{tpu_custom_call.1} parent=11 // pred_fallthru
          _
        // Predicated region
        $region17: #{tpu_custom_call.1} parent=11 // pred_check
          %p234 = pneg %p85
        $region18: #{tpu_custom_call.1} parent=11 // pred_check_branch
          %236 = sbr.rel (%p234) target = $region20
        $region19: #{tpu_custom_call.1} parent=11 // pred_region
          _
        $region20: #{tpu_custom_call.1} parent=11 // pred_fallthru
          _
        // Predicated region
        $region21: #{tpu_custom_call.1} parent=11 // pred_check
          %p237 = pneg %p106
        $region22: #{tpu_custom_call.1} parent=11 // pred_check_branch
          %239 = sbr.rel (%p237) target = $region24
        $region23: #{tpu_custom_call.1} parent=11 // pred_region
          _
        $region24: #{tpu_custom_call.1} parent=11 // pred_fallthru
          _
        // Predicated region
        $region25: #{tpu_custom_call.1} parent=11 // pred_check
          %p240 = pneg %p127
        $region26: #{tpu_custom_call.1} parent=11 // pred_check_branch
          %242 = sbr.rel (%p240) target = $region28
        $region27: #{tpu_custom_call.1} parent=11 // pred_region
          _
        $region28: #{tpu_custom_call.1} parent=11 // pred_fallthru
          _
        // Predicated region
        $region29: #{tpu_custom_call.1} parent=11 // pred_check
          %p243 = pneg %p148
        $region30: #{tpu_custom_call.1} parent=11 // pred_check_branch
          %245 = sbr.rel (%p243) target = $region32
        $region31: #{tpu_custom_call.1} parent=11 // pred_region
          _
        $region32: #{tpu_custom_call.1} parent=11 // pred_fallthru
          _
        // Predicated region
        $region33: #{tpu_custom_call.1} parent=11 // pred_check
          %p246 = pneg %p169
        $region34: #{tpu_custom_call.1} parent=11 // pred_check_branch
          %248 = sbr.rel (%p246) target = $region36
        $region35: #{tpu_custom_call.1} parent=11 // pred_region
          _
        $region36: #{tpu_custom_call.1} parent=11 // pred_fallthru
          _
        // Predicated region
        $region37: #{tpu_custom_call.1} parent=11 // pred_check
          %p249 = pneg %p190
        $region38: #{tpu_custom_call.1} parent=11 // pred_check_branch
          %251 = sbr.rel (%p249) target = $region40
        $region39: #{tpu_custom_call.1} parent=11 // pred_region
          _
        $region40: #{tpu_custom_call.1} parent=11 // pred_fallthru
          _
      $region12: #{tpu_custom_call.1} parent=5 // pred_fallthru
        _
      %p252 = scmp.lt.s32.totalorder %s17, 2
      // Predicated region
      $region41: #{tpu_custom_call.1} parent=5 // pred_check
        %p253 = pneg %p252
      $region42: #{tpu_custom_call.1} parent=5 // pred_check_branch
        %255 = sbr.rel (%p253) target = $region44
      $region43: #{tpu_custom_call.1} parent=5 // pred_region
        // Predicated region
        $region45: #{tpu_custom_call.1} parent=43 // pred_check
          %p256 = pneg %p37
        $region46: #{tpu_custom_call.1} parent=43 // pred_check_branch
          %258 = sbr.rel (%p256) target = $region48
        $region47: #{tpu_custom_call.1} parent=43 // pred_region
          %p259 = scmp.lt.s32.totalorder %s17, 1
          %s260 = scalar_select %p259, %s17, 1
          %s261 = smul.addr %s260, 2
          %s262 = smul.addr %s261, 8
          %s263 = scalar_lea.vmem %s0, %s262
        $region48: #{tpu_custom_call.1} parent=43 // pred_fallthru
          _
      $region44: #{tpu_custom_call.1} parent=5 // pred_fallthru
        _
      %p264 = scmp.le.s32.totalorder 1, %s17
      %p265 = scmp.lt.s32.totalorder %s17, 3
      %p266 = pnand %p264, %p265
      %p267 = pneg %p266
      // Predicated region
      $region49: #{tpu_custom_call.1} parent=5 // pred_check
        _
      $region50: #{tpu_custom_call.1} parent=5 // pred_check_branch
        %269 = sbr.rel (%p266) target = $region52
      $region51: #{tpu_custom_call.1} parent=5 // pred_region
        %s270 = ssub.s32 %s17, 1
        %p271 = scmp.lt.s32.totalorder %s22, 1
        %s272 = scalar_select %p271, %s22, 1
        %s273 = smul.addr %s272, 2
        %s274 = smul.addr %s273, 8
        %s275 = scalar_lea.vmem %s0, %s274
        %p276 = pneg %p43
        %p277 = pneg %p40
        %p278 = pneg %p64
        %p279 = pneg %p61
        %p280 = pneg %p85
        %p281 = pneg %p82
        %p282 = pneg %p106
        %p283 = pneg %p103
        %p284 = pneg %p127
        %p285 = pneg %p124
        %p286 = pneg %p148
        %p287 = pneg %p145
        %p288 = pneg %p169
        %p289 = pneg %p166
        %p290 = pneg %p190
        %p291 = pneg %p187
        %p292 = pneg %p216
        %p293 = pneg %p213
        %s294 = sand.u32 %s203, 1
        %s295 = scalar_lea.sflag [#allocation4], %s294
        %s296 = sand.u32 %s203, 1
        %s297 = smul.addr %s296, 128
        %s298 = scalar_lea.vmem [#allocation3], %s297
        %p299 = scmp.lt.s32.totalorder %s22, 1
        %s300 = scalar_select %p299, %s22, 1
        %s301 = smul.addr %s300, 2
        %s302 = smul.addr %s301, 8
        %s303 = scalar_lea.vmem %s0, %s302
        %v304 = vlaneseq
        %v305 = vand.u32 %v304, 127
        %v306 = vadd.s32 %v305, 128
        %v307 = vand.u32 %v305, 15
        %v308 = vand.u32 %v306, 15
        %vm309 = vcmp.ne.s32.totalorder %v307, 0
        %vm310 = vcmp.ne.s32.totalorder %v308, 0
        %v311 = vsel %vm309, 1, 0
        %v312 = vsel %vm310, 1, 0
        %v313 = vcvt.s32.f32 %v311
        %v314 = vcvt.s32.f32 %v312
        %vm315 = vcmp.ne.s32.totalorder %v307, 15
        %vm316 = vcmp.ne.s32.totalorder %v308, 15
        %v317 = vsel %vm315, 1, 0
        %v318 = vsel %vm316, 1, 0
        %v319 = vcvt.s32.f32 %v317
        %v320 = vcvt.s32.f32 %v318
        %vm321 = vcmask 138240
        %322 = vst.msk [vmem:[#allocation2] sm:$0xff] %vm321, 0.0
        %vm323 = vcmask 277640
        %324 = vst.msk [vmem:[#allocation2 + $0x10] sm:$0xff] %vm323, 0.0
        %v325 = vld [vmem:[%s303] sm:$0xff]
        %v326 = vld [vmem:[%s303 + $0x8] sm:$0xff]
        %v327 = vld [vmem:[%s3] sm:$0xff]
        %s328 = scalar_lea.vmem %s3, 8
        %v329 = vld [vmem:[%s328] sm:$0xff]
        %s330 = scalar_lea.vmem %s3, 16
        %v331 = vld [vmem:[%s330] sm:$0xff]
        %333 = vset.pattern.permute.xlu0 0
        %334 = vperm.xlu0 %333, %v327
        %v335 = vpop.permute.xlu0 %334
        %v337 = vmul.f32 %v325, %v335
        %v338 = vmul.f32 %v326, %v335
        %340 = vset.pattern.permute.xlu0 0
        %341 = vperm.xlu0 %340, %v329
        %v342 = vpop.permute.xlu0 %341
        %v344 = vadd.f32 %v337, %v342
        %v345 = vadd.f32 %v338, %v342
        %v346 = vmax.f32 %v344, 0.0
        %v347 = vmax.f32 %v345, 0.0
        %350 = vrot.lane.b32.xlu0 %v346, 17
        %v351 = vpop.permute.xlu0 %350
        %352 = vrot.lane.b32.xlu0 %v347, 17
        %v353 = vpop.permute.xlu0 %352
        %v354 = vsel %vm321, %v351, %v353
        %vm358 = vcmask 1047688
        %359 = vst.msk [vmem:[#allocation2] sm:$0xff] %vm358, %v351
        %360 = vst [vmem:[#allocation2 + $0x8] sm:$0xff] %v354
        %361 = vst.msk [vmem:[#allocation2 + $0x10] sm:$0xff] %vm321, %v353
        %v362 = vld [vmem:[%s1] sm:$0xff]
        %v363 = vld [vmem:[#allocation2] sm:$0xff]
        %v364 = vld [vmem:[#allocation2 + $0x8] sm:$0xff]
        %v365 = vmul.f32 %v363, %v313
        %v366 = vmul.f32 %v364, %v314
        %v367 = vld [vmem:[#allocation2 + $0x10] sm:$0xff]
        %370 = vrot.lane.b32.xlu0 %v319, 2
        %v371 = vpop.permute.xlu0 %370
        %372 = vrot.lane.b32.xlu0 %v320, 2
        %v373 = vpop.permute.xlu0 %372
        %vm374 = vcmask 15360
        %v375 = vsel %vm374, %v371, %v373
        %v379 = vmul.f32 %v363, %v371
        %v380 = vmul.f32 %v364, %v375
        %v381 = vmul.f32 %v367, %v373
        %384 = vrot.lane.b32.xlu0 %v313, 16
        %v385 = vpop.permute.xlu0 %384
        %386 = vrot.lane.b32.xlu0 %v314, 16
        %v387 = vpop.permute.xlu0 %386
        %vm388 = vcmask 130048
        %v389 = vsel %vm388, %v385, %v387
        %v393 = vmul.f32 %v363, %v385
        %v394 = vmul.f32 %v364, %v389
        %v395 = vmul.f32 %v367, %v387
        %396 = vrot.lane.b32.xlu0 %v319, 18
        %v397 = vpop.permute.xlu0 %396
        %398 = vrot.lane.b32.xlu0 %v320, 18
        %v399 = vpop.permute.xlu0 %398
        %vm400 = vcmask 146432
        %v401 = vsel %vm400, %v397, %v399
        %v405 = vmul.f32 %v363, %v397
        %v406 = vmul.f32 %v364, %v401
        %v407 = vmul.f32 %v367, %v399
        %408 = vrot.lane.b32.xlu0 %v313, 32
        %v409 = vpop.permute.xlu0 %408
        %410 = vrot.lane.b32.xlu0 %v314, 32
        %v411 = vpop.permute.xlu0 %410
        %vm412 = vcmask 261120
        %v413 = vsel %vm412, %v409, %v411
        %v417 = vmul.f32 %v363, %v409
        %v418 = vmul.f32 %v364, %v413
        %v419 = vmul.f32 %v367, %v411
        %420 = vrot.lane.b32.xlu0 %v319, 34
        %v421 = vpop.permute.xlu0 %420
        %422 = vrot.lane.b32.xlu0 %v320, 34
        %v423 = vpop.permute.xlu0 %422
        %vm424 = vcmask 277504
        %v425 = vsel %vm424, %v421, %v423
        %v429 = vmul.f32 %v363, %v421
        %v430 = vmul.f32 %v364, %v425
        %v431 = vmul.f32 %v367, %v423
        %435 = vrot.lane.b32.xlu0 %v363, 127
        %v436 = vpop.permute.xlu0 %435
        %437 = vrot.lane.b32.xlu0 %v364, 127
        %v438 = vpop.permute.xlu0 %437
        %439 = vrot.lane.b32.xlu0 %v367, 127
        %v440 = vpop.permute.xlu0 %439
        %vm441 = vcmask 1039360
        %v442 = vsel %vm441, %v436, %v438
        %v443 = vsel %vm441, %v438, %v440
        %449 = vrot.lane.b32.xlu0 %v379, 126
        %v450 = vpop.permute.xlu0 %449
        %451 = vrot.lane.b32.xlu0 %v380, 126
        %v452 = vpop.permute.xlu0 %451
        %453 = vrot.lane.b32.xlu0 %v381, 126
        %v454 = vpop.permute.xlu0 %453
        %vm455 = vcmask 1031168
        %v456 = vsel %vm455, %v450, %v452
        %v457 = vsel %vm455, %v452, %v454
        %463 = vrot.lane.b32.xlu0 %v393, 112
        %v464 = vpop.permute.xlu0 %463
        %465 = vrot.lane.b32.xlu0 %v394, 112
        %v466 = vpop.permute.xlu0 %465
        %467 = vrot.lane.b32.xlu0 %v395, 112
        %v468 = vpop.permute.xlu0 %467
        %vm469 = vcmask 916480
        %v470 = vsel %vm469, %v464, %v466
        %v471 = vsel %vm469, %v466, %v468
        %474 = vrot.lane.b32.xlu0 %v363, 111
        %v475 = vpop.permute.xlu0 %474
        %476 = vrot.lane.b32.xlu0 %v364, 111
        %v477 = vpop.permute.xlu0 %476
        %478 = vrot.lane.b32.xlu0 %v367, 111
        %v479 = vpop.permute.xlu0 %478
        %vm480 = vcmask 908288
        %v481 = vsel %vm480, %v475, %v477
        %v482 = vsel %vm480, %v477, %v479
        %488 = vrot.lane.b32.xlu0 %v405, 110
        %v489 = vpop.permute.xlu0 %488
        %490 = vrot.lane.b32.xlu0 %v406, 110
        %v491 = vpop.permute.xlu0 %490
        %492 = vrot.lane.b32.xlu0 %v407, 110
        %v493 = vpop.permute.xlu0 %492
        %vm494 = vcmask 900096
        %v495 = vsel %vm494, %v489, %v491
        %v496 = vsel %vm494, %v491, %v493
        %502 = vrot.lane.b32.xlu0 %v417, 96
        %v503 = vpop.permute.xlu0 %502
        %504 = vrot.lane.b32.xlu0 %v418, 96
        %v505 = vpop.permute.xlu0 %504
        %506 = vrot.lane.b32.xlu0 %v419, 96
        %v507 = vpop.permute.xlu0 %506
        %vm508 = vcmask 785408
        %v509 = vsel %vm508, %v503, %v505
        %v510 = vsel %vm508, %v505, %v507
        %513 = vrot.lane.b32.xlu0 %v363, 95
        %v514 = vpop.permute.xlu0 %513
        %515 = vrot.lane.b32.xlu0 %v364, 95
        %v516 = vpop.permute.xlu0 %515
        %517 = vrot.lane.b32.xlu0 %v367, 95
        %v518 = vpop.permute.xlu0 %517
        %vm519 = vcmask 777216
        %v520 = vsel %vm519, %v514, %v516
        %v521 = vsel %vm519, %v516, %v518
        %527 = vrot.lane.b32.xlu0 %v429, 94
        %v528 = vpop.permute.xlu0 %527
        %529 = vrot.lane.b32.xlu0 %v430, 94
        %v530 = vpop.permute.xlu0 %529
        %531 = vrot.lane.b32.xlu0 %v431, 94
        %v532 = vpop.permute.xlu0 %531
        %vm533 = vcmask 769024
        %v534 = vsel %vm533, %v528, %v530
        %v535 = vsel %vm533, %v530, %v532
        %539 = vset.pattern.permute.xlu0 0
        %540 = vperm.xlu0 %539, %v331
        %v541 = vpop.permute.xlu0 %540
        %vm543 = vcmask 588800
        %v545 = vsel %vm543, %v362, 0
        %547 = vmatpush.msra.mxu0 0.0
        %548 = vmatpush.msra.mxu0 0.0
        %549 = vmatpush.msra.mxu0 0.0
        %550 = vmatpush.msra.mxu0 0.0
        %551 = vmatpush.msra.mxu0 0.0
        %552 = vmatpush.msra.mxu0 0.0
        %553 = vmatpush.msra.mxu0 0.0
        %554 = vmatpush.msra.mxu0 %v534
        %555 = vmatpush.msra.mxu0 %v520
        %556 = vmatpush.msra.mxu0 %v509
        %557 = vmatpush.msra.mxu0 %v495
        %558 = vmatpush.msra.mxu0 %v481
        %559 = vmatpush.msra.mxu0 %v470
        %560 = vmatpush.msra.mxu0 %v456
        %561 = vmatpush.msra.mxu0 %v442
        %562 = vmatpush.msra.mxu0 %v365
        %563 = vmatmul.f32.gmra.mxu0 %v545
        %v564 = vpop.f32.mrf.mxu0
        %v565 = vadd.f32 %v541, %v564
        %566 = vdwg.mxu0
        %567 = vmatpush.msra.mxu0 0.0
        %568 = vmatpush.msra.mxu0 0.0
        %569 = vmatpush.msra.mxu0 0.0
        %570 = vmatpush.msra.mxu0 0.0
        %571 = vmatpush.msra.mxu0 0.0
        %572 = vmatpush.msra.mxu0 0.0
        %573 = vmatpush.msra.mxu0 0.0
        %574 = vmatpush.msra.mxu0 %v535
        %575 = vmatpush.msra.mxu0 %v521
        %576 = vmatpush.msra.mxu0 %v510
        %577 = vmatpush.msra.mxu0 %v496
        %578 = vmatpush.msra.mxu0 %v482
        %579 = vmatpush.msra.mxu0 %v471
        %580 = vmatpush.msra.mxu0 %v457
        %581 = vmatpush.msra.mxu0 %v443
        %582 = vmatpush.msra.mxu0 %v366
        %583 = vmatmul.f32.gmra.mxu0 %v545
        %v584 = vpop.f32.mrf.mxu0
        %v585 = vadd.f32 %v541, %v584
        %586 = vdwg.mxu0
        %v587 = vmax.f32 %v565, 0.0
        %v588 = vmax.f32 %v585, 0.0
        %591 = vrot.lane.b32.xlu0 %v587, 17
        %v592 = vpop.permute.xlu0 %591
        %593 = vrot.lane.b32.xlu0 %v588, 17
        %v594 = vpop.permute.xlu0 %593
        %v595 = vsel %vm321, %v592, %v594
        %599 = vst.msk [vmem:[#allocation2] sm:$0xff] %vm358, %v592
        %600 = vst [vmem:[#allocation2 + $0x8] sm:$0xff] %v595
        %601 = vst.msk [vmem:[#allocation2 + $0x10] sm:$0xff] %vm321, %v594
        %v602 = vld [vmem:[%s2] sm:$0xff]
        %v603 = vld [vmem:[#allocation2] sm:$0xff]
        %v604 = vld [vmem:[#allocation2 + $0x8] sm:$0xff]
        %v605 = vmul.f32 %v603, %v313
        %v606 = vmul.f32 %v604, %v314
        %v607 = vld [vmem:[#allocation2 + $0x10] sm:$0xff]
        %v608 = vmul.f32 %v603, %v371
        %v609 = vmul.f32 %v604, %v375
        %v610 = vmul.f32 %v607, %v373
        %v611 = vmul.f32 %v603, %v385
        %v612 = vmul.f32 %v604, %v389
        %v613 = vmul.f32 %v607, %v387
        %v614 = vmul.f32 %v603, %v397
        %v615 = vmul.f32 %v604, %v401
        %v616 = vmul.f32 %v607, %v399
        %v617 = vmul.f32 %v603, %v409
        %v618 = vmul.f32 %v604, %v413
        %v619 = vmul.f32 %v607, %v411
        %v620 = vmul.f32 %v603, %v421
        %v621 = vmul.f32 %v604, %v425
        %v622 = vmul.f32 %v607, %v423
        %626 = vrot.lane.b32.xlu0 %v603, 127
        %v627 = vpop.permute.xlu0 %626
        %628 = vrot.lane.b32.xlu0 %v604, 127
        %v629 = vpop.permute.xlu0 %628
        %630 = vrot.lane.b32.xlu0 %v607, 127
        %v631 = vpop.permute.xlu0 %630
        %v632 = vsel %vm441, %v627, %v629
        %v633 = vsel %vm441, %v629, %v631
        %639 = vrot.lane.b32.xlu0 %v608, 126
        %v640 = vpop.permute.xlu0 %639
        %641 = vrot.lane.b32.xlu0 %v609, 126
        %v642 = vpop.permute.xlu0 %641
        %643 = vrot.lane.b32.xlu0 %v610, 126
        %v644 = vpop.permute.xlu0 %643
        %v645 = vsel %vm455, %v640, %v642
        %v646 = vsel %vm455, %v642, %v644
        %652 = vrot.lane.b32.xlu0 %v611, 112
        %v653 = vpop.permute.xlu0 %652
        %654 = vrot.lane.b32.xlu0 %v612, 112
        %v655 = vpop.permute.xlu0 %654
        %656 = vrot.lane.b32.xlu0 %v613, 112
        %v657 = vpop.permute.xlu0 %656
        %v658 = vsel %vm469, %v653, %v655
        %v659 = vsel %vm469, %v655, %v657
        %662 = vrot.lane.b32.xlu0 %v603, 111
        %v663 = vpop.permute.xlu0 %662
        %664 = vrot.lane.b32.xlu0 %v604, 111
        %v665 = vpop.permute.xlu0 %664
        %666 = vrot.lane.b32.xlu0 %v607, 111
        %v667 = vpop.permute.xlu0 %666
        %v668 = vsel %vm480, %v663, %v665
        %v669 = vsel %vm480, %v665, %v667
        %675 = vrot.lane.b32.xlu0 %v614, 110
        %v676 = vpop.permute.xlu0 %675
        %677 = vrot.lane.b32.xlu0 %v615, 110
        %v678 = vpop.permute.xlu0 %677
        %679 = vrot.lane.b32.xlu0 %v616, 110
        %v680 = vpop.permute.xlu0 %679
        %v681 = vsel %vm494, %v676, %v678
        %v682 = vsel %vm494, %v678, %v680
        %688 = vrot.lane.b32.xlu0 %v617, 96
        %v689 = vpop.permute.xlu0 %688
        %690 = vrot.lane.b32.xlu0 %v618, 96
        %v691 = vpop.permute.xlu0 %690
        %692 = vrot.lane.b32.xlu0 %v619, 96
        %v693 = vpop.permute.xlu0 %692
        %v694 = vsel %vm508, %v689, %v691
        %v695 = vsel %vm508, %v691, %v693
        %698 = vrot.lane.b32.xlu0 %v603, 95
        %v699 = vpop.permute.xlu0 %698
        %700 = vrot.lane.b32.xlu0 %v604, 95
        %v701 = vpop.permute.xlu0 %700
        %702 = vrot.lane.b32.xlu0 %v607, 95
        %v703 = vpop.permute.xlu0 %702
        %v704 = vsel %vm519, %v699, %v701
        %v705 = vsel %vm519, %v701, %v703
        %711 = vrot.lane.b32.xlu0 %v620, 94
        %v712 = vpop.permute.xlu0 %711
        %713 = vrot.lane.b32.xlu0 %v621, 94
        %v714 = vpop.permute.xlu0 %713
        %715 = vrot.lane.b32.xlu0 %v622, 94
        %v716 = vpop.permute.xlu0 %715
        %v717 = vsel %vm533, %v712, %v714
        %v718 = vsel %vm533, %v714, %v716
        %v722 = vsel %vm543, %v602, 0
        %724 = vmatpush.msra.mxu0 0.0
        %725 = vmatpush.msra.mxu0 0.0
        %726 = vmatpush.msra.mxu0 0.0
        %727 = vmatpush.msra.mxu0 0.0
        %728 = vmatpush.msra.mxu0 0.0
        %729 = vmatpush.msra.mxu0 0.0
        %730 = vmatpush.msra.mxu0 0.0
        %731 = vmatpush.msra.mxu0 %v717
        %732 = vmatpush.msra.mxu0 %v704
        %733 = vmatpush.msra.mxu0 %v694
        %734 = vmatpush.msra.mxu0 %v681
        %735 = vmatpush.msra.mxu0 %v668
        %736 = vmatpush.msra.mxu0 %v658
        %737 = vmatpush.msra.mxu0 %v645
        %738 = vmatpush.msra.mxu0 %v632
        %739 = vmatpush.msra.mxu0 %v605
        %740 = vmatmul.f32.gmra.mxu0 %v722
        %v741 = vpop.f32.mrf.mxu0
        %v742 = vadd.f32 %v325, %v741
        %743 = vdwg.mxu0
        %744 = vmatpush.msra.mxu0 0.0
        %745 = vmatpush.msra.mxu0 0.0
        %746 = vmatpush.msra.mxu0 0.0
        %747 = vmatpush.msra.mxu0 0.0
        %748 = vmatpush.msra.mxu0 0.0
        %749 = vmatpush.msra.mxu0 0.0
        %750 = vmatpush.msra.mxu0 0.0
        %751 = vmatpush.msra.mxu0 %v718
        %752 = vmatpush.msra.mxu0 %v705
        %753 = vmatpush.msra.mxu0 %v695
        %754 = vmatpush.msra.mxu0 %v682
        %755 = vmatpush.msra.mxu0 %v669
        %756 = vmatpush.msra.mxu0 %v659
        %757 = vmatpush.msra.mxu0 %v646
        %758 = vmatpush.msra.mxu0 %v633
        %759 = vmatpush.msra.mxu0 %v606
        %760 = vmatmul.f32.gmra.mxu0 %v722
        %v761 = vpop.f32.mrf.mxu0
        %v762 = vadd.f32 %v326, %v761
        %763 = vdwg.mxu0
        %s764 = scalar_lea.vmem %s3, 24
        %v765 = vld [vmem:[%s764] sm:$0xff]
        %s766 = scalar_lea.vmem %s3, 32
        %v767 = vld [vmem:[%s766] sm:$0xff]
        %s768 = scalar_lea.vmem %s3, 40
        %v769 = vld [vmem:[%s768] sm:$0xff]
        %771 = vset.pattern.permute.xlu0 0
        %772 = vperm.xlu0 %771, %v765
        %v773 = vpop.permute.xlu0 %772
        %v775 = vmul.f32 %v742, %v773
        %v776 = vmul.f32 %v762, %v773
        %778 = vset.pattern.permute.xlu0 0
        %779 = vperm.xlu0 %778, %v767
        %v780 = vpop.permute.xlu0 %779
        %v782 = vadd.f32 %v775, %v780
        %v783 = vadd.f32 %v776, %v780
        %v784 = vmax.f32 %v782, 0.0
        %v785 = vmax.f32 %v783, 0.0
        %788 = vrot.lane.b32.xlu0 %v784, 17
        %v789 = vpop.permute.xlu0 %788
        %790 = vrot.lane.b32.xlu0 %v785, 17
        %v791 = vpop.permute.xlu0 %790
        %v792 = vsel %vm321, %v789, %v791
        %796 = vst.msk [vmem:[#allocation2] sm:$0xff] %vm358, %v789
        %797 = vst [vmem:[#allocation2 + $0x8] sm:$0xff] %v792
        %798 = vst.msk [vmem:[#allocation2 + $0x10] sm:$0xff] %vm321, %v791
        %s799 = scalar_lea.vmem %s1, 8
        %v800 = vld [vmem:[%s799] sm:$0xff]
        %v801 = vld [vmem:[#allocation2] sm:$0xff]
        %v802 = vld [vmem:[#allocation2 + $0x8] sm:$0xff]
        %v803 = vmul.f32 %v801, %v313
        %v804 = vmul.f32 %v802, %v314
        %v805 = vld [vmem:[#allocation2 + $0x10] sm:$0xff]
        %v806 = vmul.f32 %v801, %v371
        %v807 = vmul.f32 %v802, %v375
        %v808 = vmul.f32 %v805, %v373
        %v809 = vmul.f32 %v801, %v385
        %v810 = vmul.f32 %v802, %v389
        %v811 = vmul.f32 %v805, %v387
        %v812 = vmul.f32 %v801, %v397
        %v813 = vmul.f32 %v802, %v401
        %v814 = vmul.f32 %v805, %v399
        %v815 = vmul.f32 %v801, %v409
        %v816 = vmul.f32 %v802, %v413
        %v817 = vmul.f32 %v805, %v411
        %v818 = vmul.f32 %v801, %v421
        %v819 = vmul.f32 %v802, %v425
        %v820 = vmul.f32 %v805, %v423
        %824 = vrot.lane.b32.xlu0 %v801, 127
        %v825 = vpop.permute.xlu0 %824
        %826 = vrot.lane.b32.xlu0 %v802, 127
        %v827 = vpop.permute.xlu0 %826
        %828 = vrot.lane.b32.xlu0 %v805, 127
        %v829 = vpop.permute.xlu0 %828
        %v830 = vsel %vm441, %v825, %v827
        %v831 = vsel %vm441, %v827, %v829
        %837 = vrot.lane.b32.xlu0 %v806, 126
        %v838 = vpop.permute.xlu0 %837
        %839 = vrot.lane.b32.xlu0 %v807, 126
        %v840 = vpop.permute.xlu0 %839
        %841 = vrot.lane.b32.xlu0 %v808, 126
        %v842 = vpop.permute.xlu0 %841
        %v843 = vsel %vm455, %v838, %v840
        %v844 = vsel %vm455, %v840, %v842
        %850 = vrot.lane.b32.xlu0 %v809, 112
        %v851 = vpop.permute.xlu0 %850
        %852 = vrot.lane.b32.xlu0 %v810, 112
        %v853 = vpop.permute.xlu0 %852
        %854 = vrot.lane.b32.xlu0 %v811, 112
        %v855 = vpop.permute.xlu0 %854
        %v856 = vsel %vm469, %v851, %v853
        %v857 = vsel %vm469, %v853, %v855
        %860 = vrot.lane.b32.xlu0 %v801, 111
        %v861 = vpop.permute.xlu0 %860
        %862 = vrot.lane.b32.xlu0 %v802, 111
        %v863 = vpop.permute.xlu0 %862
        %864 = vrot.lane.b32.xlu0 %v805, 111
        %v865 = vpop.permute.xlu0 %864
        %v866 = vsel %vm480, %v861, %v863
        %v867 = vsel %vm480, %v863, %v865
        %873 = vrot.lane.b32.xlu0 %v812, 110
        %v874 = vpop.permute.xlu0 %873
        %875 = vrot.lane.b32.xlu0 %v813, 110
        %v876 = vpop.permute.xlu0 %875
        %877 = vrot.lane.b32.xlu0 %v814, 110
        %v878 = vpop.permute.xlu0 %877
        %v879 = vsel %vm494, %v874, %v876
        %v880 = vsel %vm494, %v876, %v878
        %886 = vrot.lane.b32.xlu0 %v815, 96
        %v887 = vpop.permute.xlu0 %886
        %888 = vrot.lane.b32.xlu0 %v816, 96
        %v889 = vpop.permute.xlu0 %888
        %890 = vrot.lane.b32.xlu0 %v817, 96
        %v891 = vpop.permute.xlu0 %890
        %v892 = vsel %vm508, %v887, %v889
        %v893 = vsel %vm508, %v889, %v891
        %896 = vrot.lane.b32.xlu0 %v801, 95
        %v897 = vpop.permute.xlu0 %896
        %898 = vrot.lane.b32.xlu0 %v802, 95
        %v899 = vpop.permute.xlu0 %898
        %900 = vrot.lane.b32.xlu0 %v805, 95
        %v901 = vpop.permute.xlu0 %900
        %v902 = vsel %vm519, %v897, %v899
        %v903 = vsel %vm519, %v899, %v901
        %909 = vrot.lane.b32.xlu0 %v818, 94
        %v910 = vpop.permute.xlu0 %909
        %911 = vrot.lane.b32.xlu0 %v819, 94
        %v912 = vpop.permute.xlu0 %911
        %913 = vrot.lane.b32.xlu0 %v820, 94
        %v914 = vpop.permute.xlu0 %913
        %v915 = vsel %vm533, %v910, %v912
        %v916 = vsel %vm533, %v912, %v914
        %920 = vset.pattern.permute.xlu0 0
        %921 = vperm.xlu0 %920, %v769
        %v922 = vpop.permute.xlu0 %921
        %v925 = vsel %vm543, %v800, 0
        %927 = vmatpush.msra.mxu0 0.0
        %928 = vmatpush.msra.mxu0 0.0
        %929 = vmatpush.msra.mxu0 0.0
        %930 = vmatpush.msra.mxu0 0.0
        %931 = vmatpush.msra.mxu0 0.0
        %932 = vmatpush.msra.mxu0 0.0
        %933 = vmatpush.msra.mxu0 0.0
        %934 = vmatpush.msra.mxu0 %v915
        %935 = vmatpush.msra.mxu0 %v902
        %936 = vmatpush.msra.mxu0 %v892
        %937 = vmatpush.msra.mxu0 %v879
        %938 = vmatpush.msra.mxu0 %v866
        %939 = vmatpush.msra.mxu0 %v856
        %940 = vmatpush.msra.mxu0 %v843
        %941 = vmatpush.msra.mxu0 %v830
        %942 = vmatpush.msra.mxu0 %v803
        %943 = vmatmul.f32.gmra.mxu0 %v925
        %v944 = vpop.f32.mrf.mxu0
        %v945 = vadd.f32 %v922, %v944
        %946 = vdwg.mxu0
        %947 = vmatpush.msra.mxu0 0.0
        %948 = vmatpush.msra.mxu0 0.0
        %949 = vmatpush.msra.mxu0 0.0
        %950 = vmatpush.msra.mxu0 0.0
        %951 = vmatpush.msra.mxu0 0.0
        %952 = vmatpush.msra.mxu0 0.0
        %953 = vmatpush.msra.mxu0 0.0
        %954 = vmatpush.msra.mxu0 %v916
        %955 = vmatpush.msra.mxu0 %v903
        %956 = vmatpush.msra.mxu0 %v893
        %957 = vmatpush.msra.mxu0 %v880
        %958 = vmatpush.msra.mxu0 %v867
        %959 = vmatpush.msra.mxu0 %v857
        %960 = vmatpush.msra.mxu0 %v844
        %961 = vmatpush.msra.mxu0 %v831
        %962 = vmatpush.msra.mxu0 %v804
        %963 = vmatmul.f32.gmra.mxu0 %v925
        %v964 = vpop.f32.mrf.mxu0
        %v965 = vadd.f32 %v922, %v964
        %966 = vdwg.mxu0
        %v967 = vmax.f32 %v945, 0.0
        %v968 = vmax.f32 %v965, 0.0
        %971 = vrot.lane.b32.xlu0 %v967, 17
        %v972 = vpop.permute.xlu0 %971
        %973 = vrot.lane.b32.xlu0 %v968, 17
        %v974 = vpop.permute.xlu0 %973
        %v975 = vsel %vm321, %v972, %v974
        %979 = vst.msk [vmem:[#allocation2] sm:$0xff] %vm358, %v972
        %980 = vst [vmem:[#allocation2 + $0x8] sm:$0xff] %v975
        %981 = vst.msk [vmem:[#allocation2 + $0x10] sm:$0xff] %vm321, %v974
        %s982 = scalar_lea.vmem %s2, 8
        %v983 = vld [vmem:[%s982] sm:$0xff]
        %v984 = vld [vmem:[#allocation2] sm:$0xff]
        %v985 = vld [vmem:[#allocation2 + $0x8] sm:$0xff]
        %v986 = vmul.f32 %v984, %v313
        %v987 = vmul.f32 %v985, %v314
        %v988 = vld [vmem:[#allocation2 + $0x10] sm:$0xff]
        %v989 = vmul.f32 %v984, %v371
        %v990 = vmul.f32 %v985, %v375
        %v991 = vmul.f32 %v988, %v373
        %v992 = vmul.f32 %v984, %v385
        %v993 = vmul.f32 %v985, %v389
        %v994 = vmul.f32 %v988, %v387
        %v995 = vmul.f32 %v984, %v397
        %v996 = vmul.f32 %v985, %v401
        %v997 = vmul.f32 %v988, %v399
        %v998 = vmul.f32 %v984, %v409
        %v999 = vmul.f32 %v985, %v413
        %v1000 = vmul.f32 %v988, %v411
        %v1001 = vmul.f32 %v984, %v421
        %v1002 = vmul.f32 %v985, %v425
        %v1003 = vmul.f32 %v988, %v423
        %1007 = vrot.lane.b32.xlu0 %v984, 127
        %v1008 = vpop.permute.xlu0 %1007
        %1009 = vrot.lane.b32.xlu0 %v985, 127
        %v1010 = vpop.permute.xlu0 %1009
        %1011 = vrot.lane.b32.xlu0 %v988, 127
        %v1012 = vpop.permute.xlu0 %1011
        %v1013 = vsel %vm441, %v1008, %v1010
        %v1014 = vsel %vm441, %v1010, %v1012
        %1020 = vrot.lane.b32.xlu0 %v989, 126
        %v1021 = vpop.permute.xlu0 %1020
        %1022 = vrot.lane.b32.xlu0 %v990, 126
        %v1023 = vpop.permute.xlu0 %1022
        %1024 = vrot.lane.b32.xlu0 %v991, 126
        %v1025 = vpop.permute.xlu0 %1024
        %v1026 = vsel %vm455, %v1021, %v1023
        %v1027 = vsel %vm455, %v1023, %v1025
        %1033 = vrot.lane.b32.xlu0 %v992, 112
        %v1034 = vpop.permute.xlu0 %1033
        %1035 = vrot.lane.b32.xlu0 %v993, 112
        %v1036 = vpop.permute.xlu0 %1035
        %1037 = vrot.lane.b32.xlu0 %v994, 112
        %v1038 = vpop.permute.xlu0 %1037
        %v1039 = vsel %vm469, %v1034, %v1036
        %v1040 = vsel %vm469, %v1036, %v1038
        %1043 = vrot.lane.b32.xlu0 %v984, 111
        %v1044 = vpop.permute.xlu0 %1043
        %1045 = vrot.lane.b32.xlu0 %v985, 111
        %v1046 = vpop.permute.xlu0 %1045
        %1047 = vrot.lane.b32.xlu0 %v988, 111
        %v1048 = vpop.permute.xlu0 %1047
        %v1049 = vsel %vm480, %v1044, %v1046
        %v1050 = vsel %vm480, %v1046, %v1048
        %1056 = vrot.lane.b32.xlu0 %v995, 110
        %v1057 = vpop.permute.xlu0 %1056
        %1058 = vrot.lane.b32.xlu0 %v996, 110
        %v1059 = vpop.permute.xlu0 %1058
        %1060 = vrot.lane.b32.xlu0 %v997, 110
        %v1061 = vpop.permute.xlu0 %1060
        %v1062 = vsel %vm494, %v1057, %v1059
        %v1063 = vsel %vm494, %v1059, %v1061
        %1069 = vrot.lane.b32.xlu0 %v998, 96
        %v1070 = vpop.permute.xlu0 %1069
        %1071 = vrot.lane.b32.xlu0 %v999, 96
        %v1072 = vpop.permute.xlu0 %1071
        %1073 = vrot.lane.b32.xlu0 %v1000, 96
        %v1074 = vpop.permute.xlu0 %1073
        %v1075 = vsel %vm508, %v1070, %v1072
        %v1076 = vsel %vm508, %v1072, %v1074
        %1079 = vrot.lane.b32.xlu0 %v984, 95
        %v1080 = vpop.permute.xlu0 %1079
        %1081 = vrot.lane.b32.xlu0 %v985, 95
        %v1082 = vpop.permute.xlu0 %1081
        %1083 = vrot.lane.b32.xlu0 %v988, 95
        %v1084 = vpop.permute.xlu0 %1083
        %v1085 = vsel %vm519, %v1080, %v1082
        %v1086 = vsel %vm519, %v1082, %v1084
        %1092 = vrot.lane.b32.xlu0 %v1001, 94
        %v1093 = vpop.permute.xlu0 %1092
        %1094 = vrot.lane.b32.xlu0 %v1002, 94
        %v1095 = vpop.permute.xlu0 %1094
        %1096 = vrot.lane.b32.xlu0 %v1003, 94
        %v1097 = vpop.permute.xlu0 %1096
        %v1098 = vsel %vm533, %v1093, %v1095
        %v1099 = vsel %vm533, %v1095, %v1097
        %v1103 = vsel %vm543, %v983, 0
        %1105 = vmatpush.msra.mxu0 0.0
        %1106 = vmatpush.msra.mxu0 0.0
        %1107 = vmatpush.msra.mxu0 0.0
        %1108 = vmatpush.msra.mxu0 0.0
        %1109 = vmatpush.msra.mxu0 0.0
        %1110 = vmatpush.msra.mxu0 0.0
        %1111 = vmatpush.msra.mxu0 0.0
        %1112 = vmatpush.msra.mxu0 %v1098
        %1113 = vmatpush.msra.mxu0 %v1085
        %1114 = vmatpush.msra.mxu0 %v1075
        %1115 = vmatpush.msra.mxu0 %v1062
        %1116 = vmatpush.msra.mxu0 %v1049
        %1117 = vmatpush.msra.mxu0 %v1039
        %1118 = vmatpush.msra.mxu0 %v1026
        %1119 = vmatpush.msra.mxu0 %v1013
        %1120 = vmatpush.msra.mxu0 %v986
        %1121 = vmatmul.f32.gmra.mxu0 %v1103
        %v1122 = vpop.f32.mrf.mxu0
        %v1123 = vadd.f32 %v742, %v1122
        %1124 = vdwg.mxu0
        %1125 = vmatpush.msra.mxu0 0.0
        %1126 = vmatpush.msra.mxu0 0.0
        %1127 = vmatpush.msra.mxu0 0.0
        %1128 = vmatpush.msra.mxu0 0.0
        %1129 = vmatpush.msra.mxu0 0.0
        %1130 = vmatpush.msra.mxu0 0.0
        %1131 = vmatpush.msra.mxu0 0.0
        %1132 = vmatpush.msra.mxu0 %v1099
        %1133 = vmatpush.msra.mxu0 %v1086
        %1134 = vmatpush.msra.mxu0 %v1076
        %1135 = vmatpush.msra.mxu0 %v1063
        %1136 = vmatpush.msra.mxu0 %v1050
        %1137 = vmatpush.msra.mxu0 %v1040
        %1138 = vmatpush.msra.mxu0 %v1027
        %1139 = vmatpush.msra.mxu0 %v1014
        %1140 = vmatpush.msra.mxu0 %v987
        %1141 = vmatmul.f32.gmra.mxu0 %v1103
        %v1142 = vpop.f32.mrf.mxu0
        %v1143 = vadd.f32 %v762, %v1142
        %1144 = vdwg.mxu0
        %v1145 = vld [vmem:[%s7] sm:$0xff]
        %s1146 = scalar_lea.vmem %s7, 8
        %v1147 = vld [vmem:[%s1146] sm:$0xff]
        %s1148 = scalar_lea.vmem %s7, 16
        %v1149 = vld [vmem:[%s1148] sm:$0xff]
        %s1150 = scalar_lea.vmem %s7, 24
        %v1151 = vld [vmem:[%s1150] sm:$0xff]
        %s1152 = scalar_lea.vmem %s7, 32
        %v1153 = vld [vmem:[%s1152] sm:$0xff]
        %1155 = vset.pattern.permute.xlu0 0
        %1156 = vperm.xlu0 %1155, %v1145
        %v1157 = vpop.permute.xlu0 %1156
        %v1159 = vmul.f32 %v1123, %v1157
        %v1160 = vmul.f32 %v1143, %v1157
        %1162 = vset.pattern.permute.xlu0 0
        %1163 = vperm.xlu0 %1162, %v1147
        %v1164 = vpop.permute.xlu0 %1163
        %v1166 = vadd.f32 %v1159, %v1164
        %v1167 = vadd.f32 %v1160, %v1164
        %v1168 = vmax.f32 %v1166, 0.0
        %v1169 = vmax.f32 %v1167, 0.0
        %1172 = vrot.lane.b32.xlu0 %v1168, 17
        %v1173 = vpop.permute.xlu0 %1172
        %1174 = vrot.lane.b32.xlu0 %v1169, 17
        %v1175 = vpop.permute.xlu0 %1174
        %v1176 = vsel %vm321, %v1173, %v1175
        %1180 = vst.msk [vmem:[#allocation2] sm:$0xff] %vm358, %v1173
        %1181 = vst [vmem:[#allocation2 + $0x8] sm:$0xff] %v1176
        %1182 = vst.msk [vmem:[#allocation2 + $0x10] sm:$0xff] %vm321, %v1175
        %v1183 = vld [vmem:[%s4] sm:$0xff]
        %v1184 = vld [vmem:[#allocation2] sm:$0xff]
        %v1185 = vld [vmem:[#allocation2 + $0x8] sm:$0xff]
        %v1186 = vmul.f32 %v1184, %v313
        %v1187 = vmul.f32 %v1185, %v314
        %v1188 = vld [vmem:[#allocation2 + $0x10] sm:$0xff]
        %v1189 = vmul.f32 %v1184, %v371
        %v1190 = vmul.f32 %v1185, %v375
        %v1191 = vmul.f32 %v1188, %v373
        %v1192 = vmul.f32 %v1184, %v385
        %v1193 = vmul.f32 %v1185, %v389
        %v1194 = vmul.f32 %v1188, %v387
        %v1195 = vmul.f32 %v1184, %v397
        %v1196 = vmul.f32 %v1185, %v401
        %v1197 = vmul.f32 %v1188, %v399
        %v1198 = vmul.f32 %v1184, %v409
        %v1199 = vmul.f32 %v1185, %v413
        %v1200 = vmul.f32 %v1188, %v411
        %v1201 = vmul.f32 %v1184, %v421
        %v1202 = vmul.f32 %v1185, %v425
        %v1203 = vmul.f32 %v1188, %v423
        %1207 = vrot.lane.b32.xlu0 %v1184, 127
        %v1208 = vpop.permute.xlu0 %1207
        %1209 = vrot.lane.b32.xlu0 %v1185, 127
        %v1210 = vpop.permute.xlu0 %1209
        %1211 = vrot.lane.b32.xlu0 %v1188, 127
        %v1212 = vpop.permute.xlu0 %1211
        %v1213 = vsel %vm441, %v1208, %v1210
        %v1214 = vsel %vm441, %v1210, %v1212
        %1220 = vrot.lane.b32.xlu0 %v1189, 126
        %v1221 = vpop.permute.xlu0 %1220
        %1222 = vrot.lane.b32.xlu0 %v1190, 126
        %v1223 = vpop.permute.xlu0 %1222
        %1224 = vrot.lane.b32.xlu0 %v1191, 126
        %v1225 = vpop.permute.xlu0 %1224
        %v1226 = vsel %vm455, %v1221, %v1223
        %v1227 = vsel %vm455, %v1223, %v1225
        %1233 = vrot.lane.b32.xlu0 %v1192, 112
        %v1234 = vpop.permute.xlu0 %1233
        %1235 = vrot.lane.b32.xlu0 %v1193, 112
        %v1236 = vpop.permute.xlu0 %1235
        %1237 = vrot.lane.b32.xlu0 %v1194, 112
        %v1238 = vpop.permute.xlu0 %1237
        %v1239 = vsel %vm469, %v1234, %v1236
        %v1240 = vsel %vm469, %v1236, %v1238
        %1243 = vrot.lane.b32.xlu0 %v1184, 111
        %v1244 = vpop.permute.xlu0 %1243
        %1245 = vrot.lane.b32.xlu0 %v1185, 111
        %v1246 = vpop.permute.xlu0 %1245
        %1247 = vrot.lane.b32.xlu0 %v1188, 111
        %v1248 = vpop.permute.xlu0 %1247
        %v1249 = vsel %vm480, %v1244, %v1246
        %v1250 = vsel %vm480, %v1246, %v1248
        %1256 = vrot.lane.b32.xlu0 %v1195, 110
        %v1257 = vpop.permute.xlu0 %1256
        %1258 = vrot.lane.b32.xlu0 %v1196, 110
        %v1259 = vpop.permute.xlu0 %1258
        %1260 = vrot.lane.b32.xlu0 %v1197, 110
        %v1261 = vpop.permute.xlu0 %1260
        %v1262 = vsel %vm494, %v1257, %v1259
        %v1263 = vsel %vm494, %v1259, %v1261
        %1269 = vrot.lane.b32.xlu0 %v1198, 96
        %v1270 = vpop.permute.xlu0 %1269
        %1271 = vrot.lane.b32.xlu0 %v1199, 96
        %v1272 = vpop.permute.xlu0 %1271
        %1273 = vrot.lane.b32.xlu0 %v1200, 96
        %v1274 = vpop.permute.xlu0 %1273
        %v1275 = vsel %vm508, %v1270, %v1272
        %v1276 = vsel %vm508, %v1272, %v1274
        %1279 = vrot.lane.b32.xlu0 %v1184, 95
        %v1280 = vpop.permute.xlu0 %1279
        %1281 = vrot.lane.b32.xlu0 %v1185, 95
        %v1282 = vpop.permute.xlu0 %1281
        %1283 = vrot.lane.b32.xlu0 %v1188, 95
        %v1284 = vpop.permute.xlu0 %1283
        %v1285 = vsel %vm519, %v1280, %v1282
        %v1286 = vsel %vm519, %v1282, %v1284
        %1292 = vrot.lane.b32.xlu0 %v1201, 94
        %v1293 = vpop.permute.xlu0 %1292
        %1294 = vrot.lane.b32.xlu0 %v1202, 94
        %v1295 = vpop.permute.xlu0 %1294
        %1296 = vrot.lane.b32.xlu0 %v1203, 94
        %v1297 = vpop.permute.xlu0 %1296
        %v1298 = vsel %vm533, %v1293, %v1295
        %v1299 = vsel %vm533, %v1295, %v1297
        %1303 = vset.pattern.permute.xlu0 0
        %1304 = vperm.xlu0 %1303, %v1149
        %v1305 = vpop.permute.xlu0 %1304
        %v1308 = vsel %vm543, %v1183, 0
        %1310 = vmatpush.msra.mxu0 0.0
        %1311 = vmatpush.msra.mxu0 0.0
        %1312 = vmatpush.msra.mxu0 0.0
        %1313 = vmatpush.msra.mxu0 0.0
        %1314 = vmatpush.msra.mxu0 0.0
        %1315 = vmatpush.msra.mxu0 0.0
        %1316 = vmatpush.msra.mxu0 0.0
        %1317 = vmatpush.msra.mxu0 %v1298
        %1318 = vmatpush.msra.mxu0 %v1285
        %1319 = vmatpush.msra.mxu0 %v1275
        %1320 = vmatpush.msra.mxu0 %v1262
        %1321 = vmatpush.msra.mxu0 %v1249
        %1322 = vmatpush.msra.mxu0 %v1239
        %1323 = vmatpush.msra.mxu0 %v1226
        %1324 = vmatpush.msra.mxu0 %v1213
        %1325 = vmatpush.msra.mxu0 %v1186
        %1326 = vmatmul.f32.gmra.mxu0 %v1308
        %v1327 = vpop.f32.mrf.mxu0
        %v1328 = vadd.f32 %v1305, %v1327
        %1329 = vdwg.mxu0
        %1330 = vmatpush.msra.mxu0 0.0
        %1331 = vmatpush.msra.mxu0 0.0
        %1332 = vmatpush.msra.mxu0 0.0
        %1333 = vmatpush.msra.mxu0 0.0
        %1334 = vmatpush.msra.mxu0 0.0
        %1335 = vmatpush.msra.mxu0 0.0
        %1336 = vmatpush.msra.mxu0 0.0
        %1337 = vmatpush.msra.mxu0 %v1299
        %1338 = vmatpush.msra.mxu0 %v1286
        %1339 = vmatpush.msra.mxu0 %v1276
        %1340 = vmatpush.msra.mxu0 %v1263
        %1341 = vmatpush.msra.mxu0 %v1250
        %1342 = vmatpush.msra.mxu0 %v1240
        %1343 = vmatpush.msra.mxu0 %v1227
        %1344 = vmatpush.msra.mxu0 %v1214
        %1345 = vmatpush.msra.mxu0 %v1187
        %1346 = vmatmul.f32.gmra.mxu0 %v1308
        %v1347 = vpop.f32.mrf.mxu0
        %v1348 = vadd.f32 %v1305, %v1347
        %1349 = vdwg.mxu0
        %v1350 = vmax.f32 %v1328, 0.0
        %v1351 = vmax.f32 %v1348, 0.0
        %1354 = vrot.lane.b32.xlu0 %v1350, 17
        %v1355 = vpop.permute.xlu0 %1354
        %1356 = vrot.lane.b32.xlu0 %v1351, 17
        %v1357 = vpop.permute.xlu0 %1356
        %v1358 = vsel %vm321, %v1355, %v1357
        %1362 = vst.msk [vmem:[#allocation2] sm:$0xff] %vm358, %v1355
        %1363 = vst [vmem:[#allocation2 + $0x8] sm:$0xff] %v1358
        %1364 = vst.msk [vmem:[#allocation2 + $0x10] sm:$0xff] %vm321, %v1357
        %v1365 = vld [vmem:[#allocation2] sm:$0xff]
        %v1366 = vld [vmem:[#allocation2 + $0x8] sm:$0xff]
        %v1367 = vld [vmem:[#allocation2 + $0x10] sm:$0xff]
        %v1368 = vmul.f32 %v1365, %v397
        %v1369 = vmul.f32 %v1366, %v401
        %v1370 = vmul.f32 %v1367, %v399
        %v1371 = vmul.f32 %v1365, %v421
        %v1372 = vmul.f32 %v1366, %v425
        %v1373 = vmul.f32 %v1367, %v423
        %1377 = vrot.lane.b32.xlu0 %v1368, 127
        %v1378 = vpop.permute.xlu0 %1377
        %1379 = vrot.lane.b32.xlu0 %v1369, 127
        %v1380 = vpop.permute.xlu0 %1379
        %1381 = vrot.lane.b32.xlu0 %v1370, 127
        %v1382 = vpop.permute.xlu0 %1381
        %v1383 = vsel %vm441, %v1378, %v1380
        %v1384 = vsel %vm441, %v1380, %v1382
        %1388 = vrot.lane.b32.xlu0 %v1365, 112
        %v1389 = vpop.permute.xlu0 %1388
        %1390 = vrot.lane.b32.xlu0 %v1366, 112
        %v1391 = vpop.permute.xlu0 %1390
        %1392 = vrot.lane.b32.xlu0 %v1367, 112
        %v1393 = vpop.permute.xlu0 %1392
        %v1394 = vsel %vm469, %v1389, %v1391
        %v1395 = vsel %vm469, %v1391, %v1393
        %1399 = vrot.lane.b32.xlu0 %v1371, 111
        %v1400 = vpop.permute.xlu0 %1399
        %1401 = vrot.lane.b32.xlu0 %v1372, 111
        %v1402 = vpop.permute.xlu0 %1401
        %1403 = vrot.lane.b32.xlu0 %v1373, 111
        %v1404 = vpop.permute.xlu0 %1403
        %v1405 = vsel %vm480, %v1400, %v1402
        %v1406 = vsel %vm480, %v1402, %v1404
        %v1407 = vld [vmem:[%s5] sm:$0xff]
        %v1408 = vld [vmem:[%s5 + $0x8] sm:$0xff]
        %v1409 = vld [vmem:[%s5 + $0x10] sm:$0xff]
        %v1410 = vld [vmem:[%s5 + $0x18] sm:$0xff]
        %v1411 = vld [vmem:[%s5 + $0x20] sm:$0xff]
        %v1412 = vld [vmem:[%s5 + $0x28] sm:$0xff]
        %v1413 = vld [vmem:[%s5 + $0x30] sm:$0xff]
        %v1414 = vld [vmem:[%s5 + $0x38] sm:$0xff]
        %1415 = vrot.lane.b32.xlu0 %v1365, 111
        %v1416 = vpop.permute.xlu0 %1415
        %1417 = vrot.lane.b32.xlu0 %v1366, 111
        %v1418 = vpop.permute.xlu0 %1417
        %1419 = vrot.lane.b32.xlu0 %v1367, 111
        %v1420 = vpop.permute.xlu0 %1419
        %1421 = vrot.lane.b32.xlu0 %v1383, 111
        %v1422 = vpop.permute.xlu0 %1421
        %1423 = vrot.lane.b32.xlu0 %v1384, 111
        %v1424 = vpop.permute.xlu0 %1423
        %1425 = vrot.lane.b32.xlu0 %v1382, 111
        %v1426 = vpop.permute.xlu0 %1425
        %1427 = vrot.lane.b32.xlu0 %v1394, 111
        %v1428 = vpop.permute.xlu0 %1427
        %1429 = vrot.lane.b32.xlu0 %v1395, 111
        %v1430 = vpop.permute.xlu0 %1429
        %1431 = vrot.lane.b32.xlu0 %v1393, 111
        %v1432 = vpop.permute.xlu0 %1431
        %1433 = vrot.lane.b32.xlu0 %v1405, 111
        %v1434 = vpop.permute.xlu0 %1433
        %1435 = vrot.lane.b32.xlu0 %v1406, 111
        %v1436 = vpop.permute.xlu0 %1435
        %1437 = vrot.lane.b32.xlu0 %v1404, 111
        %v1438 = vpop.permute.xlu0 %1437
        %v1439 = vsel %vm480, %v1416, %v1418
        %v1440 = vsel %vm480, %v1418, %v1420
        %v1441 = vsel %vm480, %v1422, %v1424
        %v1442 = vsel %vm480, %v1424, %v1426
        %v1443 = vsel %vm480, %v1428, %v1430
        %v1444 = vsel %vm480, %v1430, %v1432
        %v1445 = vsel %vm480, %v1434, %v1436
        %v1446 = vsel %vm480, %v1436, %v1438
        %v1456 = vsel %vm412, %v1407, 0
        %v1459 = vsel %vm412, %v1408, 0
        %v1462 = vsel %vm412, %v1409, 0
        %v1465 = vsel %vm412, %v1410, 0
        %v1468 = vsel %vm412, %v1411, 0
        %v1471 = vsel %vm412, %v1412, 0
        %v1474 = vsel %vm412, %v1413, 0
        %v1477 = vsel %vm412, %v1414, 0
        %1479 = vmatpush.msra.mxu0 0.0
        %1480 = vmatpush.msra.mxu0 0.0
        %1481 = vmatpush.msra.mxu0 0.0
        %1482 = vmatpush.msra.mxu0 0.0
        %1483 = vmatpush.msra.mxu0 0.0
        %1484 = vmatpush.msra.mxu0 0.0
        %1485 = vmatpush.msra.mxu0 0.0
        %1486 = vmatpush.msra.mxu0 0.0
        %1487 = vmatpush.msra.mxu0 0.0
        %1488 = vmatpush.msra.mxu0 0.0
        %1489 = vmatpush.msra.mxu0 0.0
        %1490 = vmatpush.msra.mxu0 0.0
        %1491 = vmatpush.msra.mxu0 %v1445
        %1492 = vmatpush.msra.mxu0 %v1443
        %1493 = vmatpush.msra.mxu0 %v1441
        %1494 = vmatpush.msra.mxu0 %v1439
        %1495 = vmatmul.f32.gmra.mxu0 %v1456
        %v1496 = vpop.f32.mrf.mxu0
        %v1497 = vadd.f32 0.0, %v1496
        %1498 = vmatmul.f32.gmra.mxu0 %v1459
        %v1499 = vpop.f32.mrf.mxu0
        %v1500 = vadd.f32 0.0, %v1499
        %1501 = vmatmul.f32.gmra.mxu0 %v1462
        %v1502 = vpop.f32.mrf.mxu0
        %v1503 = vadd.f32 0.0, %v1502
        %1504 = vmatmul.f32.gmra.mxu0 %v1465
        %v1505 = vpop.f32.mrf.mxu0
        %v1506 = vadd.f32 0.0, %v1505
        %1507 = vmatmul.f32.gmra.mxu0 %v1468
        %v1508 = vpop.f32.mrf.mxu0
        %v1509 = vadd.f32 0.0, %v1508
        %1510 = vmatmul.f32.gmra.mxu0 %v1471
        %v1511 = vpop.f32.mrf.mxu0
        %v1512 = vadd.f32 0.0, %v1511
        %1513 = vmatmul.f32.gmra.mxu0 %v1474
        %v1514 = vpop.f32.mrf.mxu0
        %v1515 = vadd.f32 0.0, %v1514
        %1516 = vmatmul.f32.gmra.mxu0 %v1477
        %v1517 = vpop.f32.mrf.mxu0
        %v1518 = vadd.f32 0.0, %v1517
        %1519 = vdwg.mxu0
        %1520 = vmatpush.msra.mxu0 0.0
        %1521 = vmatpush.msra.mxu0 0.0
        %1522 = vmatpush.msra.mxu0 0.0
        %1523 = vmatpush.msra.mxu0 0.0
        %1524 = vmatpush.msra.mxu0 0.0
        %1525 = vmatpush.msra.mxu0 0.0
        %1526 = vmatpush.msra.mxu0 0.0
        %1527 = vmatpush.msra.mxu0 0.0
        %1528 = vmatpush.msra.mxu0 0.0
        %1529 = vmatpush.msra.mxu0 0.0
        %1530 = vmatpush.msra.mxu0 0.0
        %1531 = vmatpush.msra.mxu0 0.0
        %1532 = vmatpush.msra.mxu0 %v1446
        %1533 = vmatpush.msra.mxu0 %v1444
        %1534 = vmatpush.msra.mxu0 %v1442
        %1535 = vmatpush.msra.mxu0 %v1440
        %1536 = vmatmul.f32.gmra.mxu0 %v1456
        %v1537 = vpop.f32.mrf.mxu0
        %v1538 = vadd.f32 0.0, %v1537
        %1539 = vmatmul.f32.gmra.mxu0 %v1459
        %v1540 = vpop.f32.mrf.mxu0
        %v1541 = vadd.f32 0.0, %v1540
        %1542 = vmatmul.f32.gmra.mxu0 %v1462
        %v1543 = vpop.f32.mrf.mxu0
        %v1544 = vadd.f32 0.0, %v1543
        %1545 = vmatmul.f32.gmra.mxu0 %v1465
        %v1546 = vpop.f32.mrf.mxu0
        %v1547 = vadd.f32 0.0, %v1546
        %1548 = vmatmul.f32.gmra.mxu0 %v1468
        %v1549 = vpop.f32.mrf.mxu0
        %v1550 = vadd.f32 0.0, %v1549
        %1551 = vmatmul.f32.gmra.mxu0 %v1471
        %v1552 = vpop.f32.mrf.mxu0
        %v1553 = vadd.f32 0.0, %v1552
        %1554 = vmatmul.f32.gmra.mxu0 %v1474
        %v1555 = vpop.f32.mrf.mxu0
        %v1556 = vadd.f32 0.0, %v1555
        %1557 = vmatmul.f32.gmra.mxu0 %v1477
        %v1558 = vpop.f32.mrf.mxu0
        %v1559 = vadd.f32 0.0, %v1558
        %1560 = vdwg.mxu0
        %1562 = vset.pattern.permute.xlu0 0
        %1563 = vperm.xlu0 %1562, %v1151
        %v1564 = vpop.permute.xlu0 %1563
        %v1566 = vmul.f32 %v1123, %v1564
        %v1567 = vmul.f32 %v1143, %v1564
        %1569 = vset.pattern.permute.xlu0 0
        %1570 = vperm.xlu0 %1569, %v1153
        %v1571 = vpop.permute.xlu0 %1570
        %v1573 = vadd.f32 %v1566, %v1571
        %v1574 = vadd.f32 %v1567, %v1571
        %v1575 = vmax.f32 %v1573, 0.0
        %v1576 = vmax.f32 %v1574, 0.0
        %v1577 = vld [vmem:[%s6] sm:$0xff]
        %v1578 = vld [vmem:[%s6 + $0x8] sm:$0xff]
        %vm1579 = vcmask 64512
        %v1581 = vsel %vm1579, %v1577, 0
        %v1584 = vsel %vm1579, %v1578, 0
        %1586 = vmatpush.msra.mxu0 0.0
        %1587 = vmatpush.msra.mxu0 0.0
        %1588 = vmatpush.msra.mxu0 0.0
        %1589 = vmatpush.msra.mxu0 0.0
        %1590 = vmatpush.msra.mxu0 0.0
        %1591 = vmatpush.msra.mxu0 0.0
        %1592 = vmatpush.msra.mxu0 0.0
        %1593 = vmatpush.msra.mxu0 0.0
        %1594 = vmatpush.msra.mxu0 0.0
        %1595 = vmatpush.msra.mxu0 0.0
        %1596 = vmatpush.msra.mxu0 0.0
        %1597 = vmatpush.msra.mxu0 0.0
        %1598 = vmatpush.msra.mxu0 0.0
        %1599 = vmatpush.msra.mxu0 0.0
        %1600 = vmatpush.msra.mxu0 0.0
        %1601 = vmatpush.msra.mxu0 %v1575
        %1602 = vmatmul.f32.gmra.mxu0 %v1581
        %v1603 = vpop.f32.mrf.mxu0
        %v1604 = vadd.f32 0.0, %v1603
        %1605 = vmatmul.f32.gmra.mxu0 %v1584
        %v1606 = vpop.f32.mrf.mxu0
        %v1607 = vadd.f32 0.0, %v1606
        %1608 = vdwg.mxu0
        %1609 = vmatpush.msra.mxu0 0.0
        %1610 = vmatpush.msra.mxu0 0.0
        %1611 = vmatpush.msra.mxu0 0.0
        %1612 = vmatpush.msra.mxu0 0.0
        %1613 = vmatpush.msra.mxu0 0.0
        %1614 = vmatpush.msra.mxu0 0.0
        %1615 = vmatpush.msra.mxu0 0.0
        %1616 = vmatpush.msra.mxu0 0.0
        %1617 = vmatpush.msra.mxu0 0.0
        %1618 = vmatpush.msra.mxu0 0.0
        %1619 = vmatpush.msra.mxu0 0.0
        %1620 = vmatpush.msra.mxu0 0.0
        %1621 = vmatpush.msra.mxu0 0.0
        %1622 = vmatpush.msra.mxu0 0.0
        %1623 = vmatpush.msra.mxu0 0.0
        %1624 = vmatpush.msra.mxu0 %v1576
        %1625 = vmatmul.f32.gmra.mxu0 %v1581
        %v1626 = vpop.f32.mrf.mxu0
        %v1627 = vadd.f32 0.0, %v1626
        %1628 = vmatmul.f32.gmra.mxu0 %v1584
        %v1629 = vpop.f32.mrf.mxu0
        %v1630 = vadd.f32 0.0, %v1629
        %1631 = vdwg.mxu0
        %v1632 = vadd.f32 %v1497, %v1604
        %v1633 = vadd.f32 %v1538, %v1627
        %v1634 = vadd.f32 %v1500, %v1607
        %v1635 = vadd.f32 %v1541, %v1630
        %1636 = vst [vmem:[%s298] sm:$0xff] %v1632
        %1637 = vst [vmem:[%s298 + $0x8] sm:$0xff] %v1633
        %1638 = vst [vmem:[%s298 + $0x10] sm:$0xff] %v1634
        %1639 = vst [vmem:[%s298 + $0x18] sm:$0xff] %v1635
        %s1640 = scalar_lea.vmem %s298, 32 [#allocation3]
        %1641 = vst [vmem:[%s1640] sm:$0xff] %v1503
        %1642 = vst [vmem:[%s1640 + $0x8] sm:$0xff] %v1544
        %1643 = vst [vmem:[%s1640 + $0x10] sm:$0xff] %v1506
        %1644 = vst [vmem:[%s1640 + $0x18] sm:$0xff] %v1547
        %s1645 = scalar_lea.vmem %s298, 64 [#allocation3]
        %1646 = vst [vmem:[%s1645] sm:$0xff] %v1509
        %1647 = vst [vmem:[%s1645 + $0x8] sm:$0xff] %v1550
        %1648 = vst [vmem:[%s1645 + $0x10] sm:$0xff] %v1512
        %1649 = vst [vmem:[%s1645 + $0x18] sm:$0xff] %v1553
        %s1650 = scalar_lea.vmem %s298, 96 [#allocation3]
        %1651 = vst [vmem:[%s1650] sm:$0xff] %v1515
        %1652 = vst [vmem:[%s1650 + $0x8] sm:$0xff] %v1556
        %1653 = vst [vmem:[%s1650 + $0x10] sm:$0xff] %v1518
        %1654 = vst [vmem:[%s1650 + $0x18] sm:$0xff] %v1559
        %s1655 = sand.u32 %s203, 1
        %s1656 = scalar_lea.sflag [#allocation4], %s1655
        %s1657 = sand.u32 %s203, 1
        %s1658 = smul.addr %s1657, 128
        %s1659 = scalar_lea.vmem [#allocation3], %s1658
        // Predicated region
        $region53: #{tpu_custom_call.1} parent=51 // pred_check
          %p1660 = pneg %p213
        $region54: #{tpu_custom_call.1} parent=51 // pred_check_branch
          %1662 = sbr.rel (%p1660) target = $region56
        $region55: #{tpu_custom_call.1} parent=51 // pred_region
          %1664 = vsyncadd %s1656, 0
          %s1665 = smul.addr %s22, 16
          %s1666 = smul.addr %s1665, 8
          %s1667 = scalar_lea.hbm %s8, %s1666
          %s1668 = sshll.u32 %s1659, 4
          %s1669 = int_to_ptr.vmem [resolvable:$true] %s1668
          %s1670 = sshll.u32 %s1667, 4
          %s1671 = int_to_ptr.hbm [resolvable:$true] %s1670
          %1676 = dma.vmem_to_hbm [thread:$0]  %s1669, 2048, %s1671, %s1656, 256, 256, 16
        $region56: #{tpu_custom_call.1} parent=51 // pred_fallthru
          _
      $region52: #{tpu_custom_call.1} parent=5 // pred_fallthru
        _
      %p1677 = scmp.le.s32.totalorder 2, %s17
      // Predicated region
      $region57: #{tpu_custom_call.1} parent=5 // pred_check
        %p1678 = pneg %p1677
      $region58: #{tpu_custom_call.1} parent=5 // pred_check_branch
        %1680 = sbr.rel (%p1678) target = $region60
      $region59: #{tpu_custom_call.1} parent=5 // pred_region
        %s1681 = ssub.s32 %s17, 2
        // Predicated region
        $region61: #{tpu_custom_call.1} parent=59 // pred_check
          %p1682 = pneg %p219
        $region62: #{tpu_custom_call.1} parent=59 // pred_check_branch
          %1684 = sbr.rel (%p1682) target = $region64
        $region63: #{tpu_custom_call.1} parent=59 // pred_region
          %s1685 = sand.u32 %s204, 1
          %s1686 = scalar_lea.sflag [#allocation4], %s1685
          %s1687 = sand.u32 %s204, 1
          %s1688 = smul.addr %s1687, 128
          %s1689 = scalar_lea.vmem [#allocation3], %s1688
          %1691 = dma.done %s1686, 2048
        $region64: #{tpu_custom_call.1} parent=59 // pred_fallthru
          _
      $region60: #{tpu_custom_call.1} parent=5 // pred_fallthru
        _
    $region6: #{tpu_custom_call.1} parent=1 // loop_footer
      %s21 = sadd.s32 1, %s17
    $region7: #{tpu_custom_call.1} parent=1 // loop_footer_branch
      %16 = sbr.rel target = $region3
    $region8: #{tpu_custom_call.1} parent=1 // loop_exit
      _
    %1692 = vsyncpa [#allocation4], 1
    %s1693 = scalar_lea.sflag [#allocation4], 1
    %1694 = vsyncpa %s1693, 1

</llo_original>
